<compile_context>
chip_gen: v7x
topology: tpu7x:2x2x1
jax: 0.10.0
libtpu: 0.0.40
codegen_flags: <defaults>
</compile_context>

<pallas_src>
import functools

import numpy as np
import jax
import jax.numpy as jnp
from jax.experimental import pallas as pl
from jax.experimental.pallas import tpu as pltpu


# -----------------------------------------------------------------------------
# In-kernel helpers
# -----------------------------------------------------------------------------
def _mm(w_ref, act_bf16):
    """(Cout, Cin) @ (Cin, L): bf16 operands, f32 accumulation on the MXU."""
    return jnp.dot(w_ref[...], act_bf16, preferred_element_type=jnp.float32)


def _conv3x3(y_f32, w_ref, mask_rows, *, W_img, L, fused):
    """3x3 conv (padding=1, bias-free) on a channels-on-sublanes (Cin, L) tile.

    Each tap is a static lane roll of the flat tile; host-precomputed bf16 edge
    masks zero lanes where a tap would cross the zero padding (this also kills
    cross-image leakage when several images share the lane axis).

    fused=True  : taps concatenated along K -> ONE matmul, K = 9*Cin
                  (w_ref is (Cout, 9*Cin); only used when 9*Cin <= 256).
    fused=False : 9 accumulated matmuls of K = Cin (w_ref is (9, Cout, Cin));
                  bounds transient VMEM to one (Cin, L) tap tile.
    """
    bf16 = jnp.bfloat16
    y_bf = y_f32.astype(bf16)
    taps = []
    acc = None
    for ky in range(3):
        for kx in range(3):
            t = ky * 3 + kx
            off = (ky - 1) * W_img + (kx - 1)
            if off == 0:
                z = y_bf
            else:
                # z[c, i] = y[c, i + off]; wrap-around lanes are masked to 0.
                z = pltpu.roll(y_f32, shift=(-off) % L, axis=1).astype(bf16)
                z = z * mask_rows[t]
            if fused:
                taps.append(z)
            else:
                p = jnp.dot(w_ref[t], z, preferred_element_type=jnp.float32)
                acc = p if acc is None else acc + p
    if fused:
        z_all = jnp.concatenate(taps, axis=0)                  # (9*Cin, L) bf16
        return jnp.dot(w_ref[...], z_all, preferred_element_type=jnp.float32)
    return acc


# -----------------------------------------------------------------------------
# Fused HyperBottleneck kernel (G images flattened onto lanes per grid step)
# -----------------------------------------------------------------------------
def _hyper_bottleneck_kernel(x_ref, masks_ref,
                             w_in1_ref, w_in2_ref, w_vt_ref,
                             w_sum_ref, w_a_ref, w_b_ref, w_fold_ref,
                             w_out2_ref, w_out3_ref,
                             o_ref, *, dim, W_img, L, step, fused_in, fused_out):
    f32 = jnp.float32
    bf16 = jnp.bfloat16
    relu = lambda v: jnp.maximum(v, 0.0)

    x = x_ref[0].astype(f32)                                   # (dim, L)
    masks = masks_ref[...]                                     # (9, L) bf16
    # Slice each tap's mask row once; reused by both 3x3 convs.
    mask_rows = tuple(masks[t:t + 1, :] for t in range(9))

    # ---- input Bottleneck: dim -> dim//4 -> dim//4 (conv3 is folded away) ----
    y = relu(_mm(w_in1_ref, x.astype(bf16)))                   # (dim//4, L)
    y = relu(_conv3x3(y, w_in2_ref, mask_rows,
                      W_img=W_img, L=L, fused=fused_in))       # (dim//4, L)
    y_bf = y.astype(bf16)

    # ---- hyperbolic warp: only velo/theta rows of conv3; elementwise in f32 ----
    vt = _mm(w_vt_ref, y_bf)                                   # (2*dim, L)
    velo, theta = vt[:dim], vt[dim:]
    ang = theta * f32(np.pi * 6.0)
    cs = f32(step) * velo * jnp.cos(ang)
    ss = f32(step) * velo * jnp.sin(ang)
    a = ss * x + cs                                            # (dim, L)
    b = cs * x - ss                                            # (dim, L)

    # ---- output Bottleneck conv1 with warp + inp-block folded into weights:
    #      u = (W1+W2+W3+W4)@x + (W1-W4)@a + (W2-W3)@b + (W5@in_w3)@y ----
    u = (_mm(w_sum_ref, x.astype(bf16)) + _mm(w_a_ref, a.astype(bf16))
         + _mm(w_b_ref, b.astype(bf16)) + _mm(w_fold_ref, y_bf))
    u = relu(u)                                                # (2*dim, L)
    u = relu(_conv3x3(u, w_out2_ref, mask_rows,
                      W_img=W_img, L=L, fused=fused_out))      # (2*dim, L)
    out = _mm(w_out3_ref, u.astype(bf16))                      # (dim, L)

    o_ref[0] = (x + out).astype(o_ref.dtype)                   # residual add


# -----------------------------------------------------------------------------
# Host-side weight / mask preparation
# -----------------------------------------------------------------------------
def _fused_conv3x3_weight(w):
    """(Cout, Cin, 3, 3) -> (Cout, 9*Cin); K ordered (ky, kx, cin)."""
    co, ci = w.shape[0], w.shape[1]
    return jnp.transpose(w, (0, 2, 3, 1)).reshape(co, 9 * ci)


def _tap_conv3x3_weight(w):
    """(Cout, Cin, 3, 3) -> (9, Cout, Cin); leading axis ordered (ky, kx)."""
    co, ci = w.shape[0], w.shape[1]
    return jnp.transpose(w, (2, 3, 0, 1)).reshape(9, co, ci)


def _make_tap_masks(H, W):
    """(9, H*W) f32: 1 where tap (ky, kx) stays inside the image, else 0."""
    r = np.arange(H * W) // W
    c = np.arange(H * W) % W
    m = np.zeros((9, H * W), np.float32)
    for ky in range(3):
        for kx in range(3):
            dy, dx = ky - 1, kx - 1
            ok = ((r + dy >= 0) & (r + dy < H) & (c + dx >= 0) & (c + dx < W))
            m[ky * 3 + kx] = ok.astype(np.float32)
    return m


def _images_per_step(N, dim, HW, budget_bytes=12 << 20):
    """How many images to flatten onto lanes per grid step (divisor of N)."""
    per_img = HW * dim * 64          # coarse f32+bf16 activation working set
    g = int(max(1, min(N, budget_bytes // max(per_img, 1))))
    while N % g:
        g -= 1
    return g


# -----------------------------------------------------------------------------
# Wrapper
# -----------------------------------------------------------------------------
def hyper_bottleneck_forward(x_nchw, params, step):
    """x_nchw: (N, dim, H, W) float32 — same layout as the PyTorch module."""
    N, dim, H, W = x_nchw.shape
    assert dim >= 4 and dim % 4 == 0
    HW = H * W
    f32, bf16 = jnp.float32, jnp.bfloat16
    d = dim

    # Flatten G images onto lanes: activations become (dim, G*H*W).
    G = _images_per_step(N, dim, HW)
    steps = N // G
    L = G * HW
    x = (x_nchw.astype(f32).reshape(steps, G, d, HW)
         .transpose(0, 2, 1, 3).reshape(steps, d, L))

    in_w1, in_w2, in_w3 = params["in_w1"], params["in_w2"], params["in_w3"]
    out_w1, out_w2, out_w3 = params["out_w1"], params["out_w2"], params["out_w3"]

    W1 = out_w1[:, 0 * d:1 * d]
    W2 = out_w1[:, 1 * d:2 * d]
    W3 = out_w1[:, 2 * d:3 * d]
    W4 = out_w1[:, 3 * d:4 * d]
    W5 = out_w1[:, 4 * d:8 * d]

    fused_in = 9 * (d // 4) <= 256
    fused_out = 9 * (2 * d) <= 256
    conv_in_w = _fused_conv3x3_weight(in_w2) if fused_in else _tap_conv3x3_weight(in_w2)
    conv_out_w = _fused_conv3x3_weight(out_w2) if fused_out else _tap_conv3x3_weight(out_w2)

    weights = {
        "w_in1": in_w1,                       # (dim//4, dim)
        "w_in2": conv_in_w,                   # (dim//4, 9*dim//4) or (9, ., .)
        "w_vt": in_w3[2 * d:4 * d],           # velo/theta rows only (2*dim, dim//4)
        "w_sum": W1 + W2 + W3 + W4,           # (2*dim, dim)
        "w_a": W1 - W4,                       # (2*dim, dim)
        "w_b": W2 - W3,                       # (2*dim, dim)
        "w_fold": W5 @ in_w3,                 # out-conv1 o in-conv3 fold (2*dim, dim//4)
        "w_out2": conv_out_w,                 # (2*dim, 18*dim) or (9, ., .)
        "w_out3": out_w3,                     # (dim, 2*dim)
    }
    weights = {k: v.astype(bf16) for k, v in weights.items()}
    order = ("w_in1", "w_in2", "w_vt", "w_sum", "w_a", "w_b", "w_fold",
             "w_out2", "w_out3")
    w_list = [weights[k] for k in order]

    masks = jnp.asarray(np.tile(_make_tap_masks(H, W), (1, G)), dtype=bf16)  # (9, L)

    kernel = functools.partial(
        _hyper_bottleneck_kernel, dim=d, W_img=W, L=L, step=float(step),
        fused_in=fused_in, fused_out=fused_out)

    def _resident(a):  # small array resident in VMEM across grid steps
        nd = a.ndim
        return pl.BlockSpec(a.shape, lambda n, _nd=nd: (0,) * _nd)

    # Explicit VMEM budget: resident weights/masks (double-buffered by default)
    # + activation working set + headroom, floored at the usual scoped default.
    resident_bytes = sum(int(np.prod(a.shape)) * a.dtype.itemsize
                         for a in w_list + [masks])
    slab_rows = (9 * 2 * d) if fused_out else (2 * d)
    act_bytes = L * (4 * (12 * d) + 2 * slab_rows) + 4 * 4 * d * L
    vmem_limit = int(min(48 << 20,
                         max(32 << 20, 2 * resident_bytes + act_bytes + (8 << 20))))

    out = pl.pallas_call(
        kernel,
        out_shape=jax.ShapeDtypeStruct((steps, d, L), jnp.float32),
        grid=(steps,),
        in_specs=[pl.BlockSpec((1, d, L), lambda n: (n, 0, 0)),
                  _resident(masks)] + [_resident(a) for a in w_list],
        out_specs=pl.BlockSpec((1, d, L), lambda n: (n, 0, 0)),
        compiler_params=pltpu.CompilerParams(
            dimension_semantics=("parallel",),
            vmem_limit_bytes=vmem_limit),
    )(x, masks, *w_list)

    return (out.reshape(steps, d, G, HW).transpose(0, 2, 1, 3)
            .reshape(N, d, H, W))


# -----------------------------------------------------------------------------
# Synthetic parameters (PyTorch conv layout, bias-free) + pure-JAX reference
# -----------------------------------------------------------------------------
def init_params(key, dim):
    ks = jax.random.split(key, 6)

    def mk(k, shape, fan_in):
        return (jax.random.normal(k, shape, jnp.float32)
                * jnp.float32(1.0 / np.sqrt(fan_in)))

    m_in = dim // 4            # input bottleneck mid channels
    m_out = (8 * dim) // 4     # output bottleneck mid channels
    return {
        # input Bottleneck: dim -> dim//4 -> dim//4 -> 4*dim
        "in_w1": mk(ks[0], (m_in, dim), dim),
        "in_w2": mk(ks[1], (m_in, m_in, 3, 3), 9 * m_in),
        "in_w3": mk(ks[2], (4 * dim, m_in), m_in),
        # output Bottleneck: 8*dim -> 2*dim -> 2*dim -> dim
        "out_w1": mk(ks[3], (m_out, 8 * dim), 8 * dim),
        "out_w2": mk(ks[4], (m_out, m_out, 3, 3), 9 * m_out),
        "out_w3": mk(ks[5], (dim, m_out), m_out),
    }


def _reference_forward(x, params, step):
    """Pure-JAX (lax.conv) reference of the PyTorch module; conv/matmul inputs
    are rounded to bf16 to mirror the kernel's mixed precision."""
    f32, bf16 = jnp.float32, jnp.bfloat16
    q = lambda v: v.astype(bf16).astype(f32)
    relu = lambda v: jnp.maximum(v, 0.0)
    dim = params["in_w1"].shape[1]

    def conv1x1(w, v):
        return jnp.einsum("oc,nchw->nohw", q(w), q(v))

    def conv3x3(w, v):
        return jax.lax.conv_general_dilated(
            q(v), q(w), window_strides=(1, 1), padding=((1, 1), (1, 1)),
            dimension_numbers=("NCHW", "OIHW", "NCHW"))

    def bottleneck(v, w1, w2, w3):
        y = relu(conv1x1(w1, v))
        y = relu(conv3x3(w2, y))
        return conv1x1(w3, y)          # WarpLayer treated as identity

    inp = bottleneck(x, params["in_w1"], params["in_w2"], params["in_w3"])
    velo = inp[:, 2 * dim:3 * dim]
    theta = inp[:, 3 * dim:]
    cs = step * velo * jnp.cos(theta * np.pi * 6.0)
    ss = step * velo * jnp.sin(theta * np.pi * 6.0)
    y1 = (1.0 + ss) * x + cs
    y2 = (1.0 + cs) * x - ss
    y3 = (1.0 - cs) * x + ss
    y4 = (1.0 - ss) * x - cs
    ys = jnp.concatenate((y1, y2, y3, y4, inp), axis=1)
    return x + bottleneck(ys, params["out_w1"], params["out_w2"], params["out_w3"])


if __name__ == "__main__":
    key = jax.random.PRNGKey(0)
    k_x, k_p = jax.random.split(key)

    N, dim, H, W = 2, 4, 16, 16
    step = 0.25   # module hyperparameter (e.g. 1 / num_layers)

    x = jax.random.normal(k_x, (N, dim, H, W), jnp.float32)   # NCHW like PyTorch
    params = init_params(k_p, dim)

    out = hyper_bottleneck_forward(x, params, step)
    out = jax.block_until_ready(out)

    assert out.shape == (N, dim, H, W)
    assert bool(jnp.all(jnp.isfinite(out)))

    # Loose bf16-aware check against the pure-JAX reference (catches layout /
    # indexing / weight-fold bugs; bf16 + 6*pi phase amplification precludes
    # tight matching).
    ref = _reference_forward(x, params, step)
    err = float(jnp.max(jnp.abs(out - ref)))
    scale = float(jnp.max(jnp.abs(ref)))
    assert err <= 0.1 * (1.0 + scale), (err, scale)

    print("KERNEL_OK")
</pallas_src>

<mosaic_0001>
module attributes {stable_mosaic.version = 11 : i64} {
  func.func @_hyper_bottleneck_kernel(%arg0: i32, %arg1: memref<1x4x512xf32, #tpu.memory_space<vmem>>, %arg2: memref<9x512xbf16, #tpu.memory_space<vmem>>, %arg3: memref<1x4xbf16, #tpu.memory_space<vmem>>, %arg4: memref<1x9xbf16, #tpu.memory_space<vmem>>, %arg5: memref<8x1xbf16, #tpu.memory_space<vmem>>, %arg6: memref<8x4xbf16, #tpu.memory_space<vmem>>, %arg7: memref<8x4xbf16, #tpu.memory_space<vmem>>, %arg8: memref<8x4xbf16, #tpu.memory_space<vmem>>, %arg9: memref<8x1xbf16, #tpu.memory_space<vmem>>, %arg10: memref<8x72xbf16, #tpu.memory_space<vmem>>, %arg11: memref<4x8xbf16, #tpu.memory_space<vmem>>, %arg12: memref<1x4x512xf32, #tpu.memory_space<vmem>>) attributes {dimension_semantics = [#tpu.dimension_semantics<parallel>], iteration_bounds = array<i64: 1>, scalar_prefetch = 0 : i64, scratch_operands = 0 : i64, tpu.core_type = #tpu.core_type<tc>, window_params = [{transform_indices = @transform_0, window_bounds = array<i64: 1, 4, 512>}, {pipeline_mode = #tpu.pipeline_mode<synchronous>, transform_indices = @transform_1, window_bounds = array<i64: 9, 512>}, {pipeline_mode = #tpu.pipeline_mode<synchronous>, transform_indices = @transform_2, window_bounds = array<i64: 1, 4>}, {pipeline_mode = #tpu.pipeline_mode<synchronous>, transform_indices = @transform_3, window_bounds = array<i64: 1, 9>}, {pipeline_mode = #tpu.pipeline_mode<synchronous>, transform_indices = @transform_4, window_bounds = array<i64: 8, 1>}, {pipeline_mode = #tpu.pipeline_mode<synchronous>, transform_indices = @transform_5, window_bounds = array<i64: 8, 4>}, {pipeline_mode = #tpu.pipeline_mode<synchronous>, transform_indices = @transform_6, window_bounds = array<i64: 8, 4>}, {pipeline_mode = #tpu.pipeline_mode<synchronous>, transform_indices = @transform_7, window_bounds = array<i64: 8, 4>}, {pipeline_mode = #tpu.pipeline_mode<synchronous>, transform_indices = @transform_8, window_bounds = array<i64: 8, 1>}, {pipeline_mode = #tpu.pipeline_mode<synchronous>, transform_indices = @transform_9, window_bounds = array<i64: 8, 72>}, {pipeline_mode = #tpu.pipeline_mode<synchronous>, transform_indices = @transform_10, window_bounds = array<i64: 4, 8>}, {transform_indices = @transform_11, window_bounds = array<i64: 1, 4, 512>}]} {
    %c0 = arith.constant 0 : index
    %c0_0 = arith.constant 0 : index
    %c0_1 = arith.constant 0 : index
    %0 = vector.load %arg1[%c0, %c0_0, %c0_1] : memref<1x4x512xf32, #tpu.memory_space<vmem>>, vector<1x4x512xf32>
    %1 = vector.shape_cast %0 : vector<1x4x512xf32> to vector<4x512xf32>
    %c0_2 = arith.constant 0 : index
    %c0_3 = arith.constant 0 : index
    %2 = vector.load %arg2[%c0_2, %c0_3] : memref<9x512xbf16, #tpu.memory_space<vmem>>, vector<9x512xbf16>
    %3 = vector.extract_strided_slice %2 {offsets = [0, 0], sizes = [1, 512], strides = [1, 1]} : vector<9x512xbf16> to vector<1x512xbf16>
    %4 = vector.extract_strided_slice %2 {offsets = [1, 0], sizes = [1, 512], strides = [1, 1]} : vector<9x512xbf16> to vector<1x512xbf16>
    %5 = vector.extract_strided_slice %2 {offsets = [2, 0], sizes = [1, 512], strides = [1, 1]} : vector<9x512xbf16> to vector<1x512xbf16>
    %6 = vector.extract_strided_slice %2 {offsets = [3, 0], sizes = [1, 512], strides = [1, 1]} : vector<9x512xbf16> to vector<1x512xbf16>
    %7 = vector.extract_strided_slice %2 {offsets = [5, 0], sizes = [1, 512], strides = [1, 1]} : vector<9x512xbf16> to vector<1x512xbf16>
    %8 = vector.extract_strided_slice %2 {offsets = [6, 0], sizes = [1, 512], strides = [1, 1]} : vector<9x512xbf16> to vector<1x512xbf16>
    %9 = vector.extract_strided_slice %2 {offsets = [7, 0], sizes = [1, 512], strides = [1, 1]} : vector<9x512xbf16> to vector<1x512xbf16>
    %10 = vector.extract_strided_slice %2 {offsets = [8, 0], sizes = [1, 512], strides = [1, 1]} : vector<9x512xbf16> to vector<1x512xbf16>
    %11 = arith.truncf %1 : vector<4x512xf32> to vector<4x512xbf16>
    %c0_4 = arith.constant 0 : index
    %c0_5 = arith.constant 0 : index
    %12 = vector.load %arg3[%c0_4, %c0_5] : memref<1x4xbf16, #tpu.memory_space<vmem>>, vector<1x4xbf16>
    %cst = arith.constant dense<0.000000e+00> : vector<1x512xf32>
    %13 = tpu.matmul %12, %11, %cst {dimension_numbers = #tpu.dot_dimension_numbers<[1], [0], [0], [1], [0, 0, 1, 1], [], []>} : vector<1x4xbf16>, vector<4x512xbf16>, vector<1x512xf32> -> vector<1x512xf32>
    %cst_6 = arith.constant 0.000000e+00 : f32
    %14 = vector.broadcast %cst_6 : f32 to vector<1x512xf32>
    %15 = arith.maximumf %13, %14 : vector<1x512xf32>
    %16 = arith.truncf %15 : vector<1x512xf32> to vector<1x512xbf16>
    %c17_i32 = arith.constant 17 : i32
    %17 = tpu.dynamic_rotate %15 by %c17_i32 dim 1 : vector<1x512xf32>, i32 -> vector<1x512xf32>
    %18 = arith.truncf %17 : vector<1x512xf32> to vector<1x512xbf16>
    %19 = arith.mulf %18, %3 : vector<1x512xbf16>
    %c16_i32 = arith.constant 16 : i32
    %20 = tpu.dynamic_rotate %15 by %c16_i32 dim 1 : vector<1x512xf32>, i32 -> vector<1x512xf32>
    %21 = arith.truncf %20 : vector<1x512xf32> to vector<1x512xbf16>
    %22 = arith.mulf %21, %4 : vector<1x512xbf16>
    %c15_i32 = arith.constant 15 : i32
    %23 = tpu.dynamic_rotate %15 by %c15_i32 dim 1 : vector<1x512xf32>, i32 -> vector<1x512xf32>
    %24 = arith.truncf %23 : vector<1x512xf32> to vector<1x512xbf16>
    %25 = arith.mulf %24, %5 : vector<1x512xbf16>
    %c1_i32 = arith.constant 1 : i32
    %26 = tpu.dynamic_rotate %15 by %c1_i32 dim 1 : vector<1x512xf32>, i32 -> vector<1x512xf32>
    %27 = arith.truncf %26 : vector<1x512xf32> to vector<1x512xbf16>
    %28 = arith.mulf %27, %6 : vector<1x512xbf16>
    %c511_i32 = arith.constant 511 : i32
    %29 = tpu.dynamic_rotate %15 by %c511_i32 dim 1 : vector<1x512xf32>, i32 -> vector<1x512xf32>
    %30 = arith.truncf %29 : vector<1x512xf32> to vector<1x512xbf16>
    %31 = arith.mulf %30, %7 : vector<1x512xbf16>
    %c497_i32 = arith.constant 497 : i32
    %32 = tpu.dynamic_rotate %15 by %c497_i32 dim 1 : vector<1x512xf32>, i32 -> vector<1x512xf32>
    %33 = arith.truncf %32 : vector<1x512xf32> to vector<1x512xbf16>
    %34 = arith.mulf %33, %8 : vector<1x512xbf16>
    %c496_i32 = arith.constant 496 : i32
    %35 = tpu.dynamic_rotate %15 by %c496_i32 dim 1 : vector<1x512xf32>, i32 -> vector<1x512xf32>
    %36 = arith.truncf %35 : vector<1x512xf32> to vector<1x512xbf16>
    %37 = arith.mulf %36, %9 : vector<1x512xbf16>
    %c495_i32 = arith.constant 495 : i32
    %38 = tpu.dynamic_rotate %15 by %c495_i32 dim 1 : vector<1x512xf32>, i32 -> vector<1x512xf32>
    %39 = arith.truncf %38 : vector<1x512xf32> to vector<1x512xbf16>
    %40 = arith.mulf %39, %10 : vector<1x512xbf16>
    %41 = tpu.concatenate %19, %22, %25, %28, %16, %31, %34, %37, %40 in 0 : vector<1x512xbf16>, vector<1x512xbf16>, vector<1x512xbf16>, vector<1x512xbf16>, vector<1x512xbf16>, vector<1x512xbf16>, vector<1x512xbf16>, vector<1x512xbf16>, vector<1x512xbf16> -> vector<9x512xbf16>
    %c0_7 = arith.constant 0 : index
    %c0_8 = arith.constant 0 : index
    %42 = vector.load %arg4[%c0_7, %c0_8] : memref<1x9xbf16, #tpu.memory_space<vmem>>, vector<1x9xbf16>
    %cst_9 = arith.constant dense<0.000000e+00> : vector<1x512xf32>
    %43 = tpu.matmul %42, %41, %cst_9 {dimension_numbers = #tpu.dot_dimension_numbers<[1], [0], [0], [1], [0, 0, 1, 1], [], []>} : vector<1x9xbf16>, vector<9x512xbf16>, vector<1x512xf32> -> vector<1x512xf32>
    %cst_10 = arith.constant 0.000000e+00 : f32
    %44 = vector.broadcast %cst_10 : f32 to vector<1x512xf32>
    %45 = arith.maximumf %43, %44 : vector<1x512xf32>
    %46 = arith.truncf %45 : vector<1x512xf32> to vector<1x512xbf16>
    %c0_11 = arith.constant 0 : index
    %c0_12 = arith.constant 0 : index
    %47 = vector.load %arg5[%c0_11, %c0_12] : memref<8x1xbf16, #tpu.memory_space<vmem>>, vector<8x1xbf16>
    %cst_13 = arith.constant dense<0.000000e+00> : vector<8x512xf32>
    %48 = tpu.matmul %47, %46, %cst_13 {dimension_numbers = #tpu.dot_dimension_numbers<[1], [0], [0], [1], [0, 0, 1, 1], [], []>} : vector<8x1xbf16>, vector<1x512xbf16>, vector<8x512xf32> -> vector<8x512xf32>
    %49 = vector.extract_strided_slice %48 {offsets = [0, 0], sizes = [4, 512], strides = [1, 1]} : vector<8x512xf32> to vector<4x512xf32>
    %50 = vector.extract_strided_slice %48 {offsets = [4, 0], sizes = [4, 512], strides = [1, 1]} : vector<8x512xf32> to vector<4x512xf32>
    %cst_14 = arith.constant 18.849556 : f32
    %51 = vector.broadcast %cst_14 : f32 to vector<4x512xf32>
    %52 = arith.mulf %50, %51 : vector<4x512xf32>
    %cst_15 = arith.constant 2.500000e-01 : f32
    %53 = vector.broadcast %cst_15 : f32 to vector<4x512xf32>
    %54 = arith.mulf %53, %49 : vector<4x512xf32>
    %55 = math.cos %52 : vector<4x512xf32>
    %56 = arith.mulf %54, %55 : vector<4x512xf32>
    %cst_16 = arith.constant 2.500000e-01 : f32
    %57 = vector.broadcast %cst_16 : f32 to vector<4x512xf32>
    %58 = arith.mulf %57, %49 : vector<4x512xf32>
    %59 = math.sin %52 : vector<4x512xf32>
    %60 = arith.mulf %58, %59 : vector<4x512xf32>
    %61 = arith.mulf %60, %1 : vector<4x512xf32>
    %62 = arith.addf %61, %56 : vector<4x512xf32>
    %63 = arith.mulf %56, %1 : vector<4x512xf32>
    %64 = arith.subf %63, %60 : vector<4x512xf32>
    %65 = arith.truncf %1 : vector<4x512xf32> to vector<4x512xbf16>
    %c0_17 = arith.constant 0 : index
    %c0_18 = arith.constant 0 : index
    %66 = vector.load %arg6[%c0_17, %c0_18] : memref<8x4xbf16, #tpu.memory_space<vmem>>, vector<8x4xbf16>
    %cst_19 = arith.constant dense<0.000000e+00> : vector<8x512xf32>
    %67 = tpu.matmul %66, %65, %cst_19 {dimension_numbers = #tpu.dot_dimension_numbers<[1], [0], [0], [1], [0, 0, 1, 1], [], []>} : vector<8x4xbf16>, vector<4x512xbf16>, vector<8x512xf32> -> vector<8x512xf32>
    %68 = arith.truncf %62 : vector<4x512xf32> to vector<4x512xbf16>
    %c0_20 = arith.constant 0 : index
    %c0_21 = arith.constant 0 : index
    %69 = vector.load %arg7[%c0_20, %c0_21] : memref<8x4xbf16, #tpu.memory_space<vmem>>, vector<8x4xbf16>
    %cst_22 = arith.constant dense<0.000000e+00> : vector<8x512xf32>
    %70 = tpu.matmul %69, %68, %cst_22 {dimension_numbers = #tpu.dot_dimension_numbers<[1], [0], [0], [1], [0, 0, 1, 1], [], []>} : vector<8x4xbf16>, vector<4x512xbf16>, vector<8x512xf32> -> vector<8x512xf32>
    %71 = arith.addf %67, %70 : vector<8x512xf32>
    %72 = arith.truncf %64 : vector<4x512xf32> to vector<4x512xbf16>
    %c0_23 = arith.constant 0 : index
    %c0_24 = arith.constant 0 : index
    %73 = vector.load %arg8[%c0_23, %c0_24] : memref<8x4xbf16, #tpu.memory_space<vmem>>, vector<8x4xbf16>
    %cst_25 = arith.constant dense<0.000000e+00> : vector<8x512xf32>
    %74 = tpu.matmul %73, %72, %cst_25 {dimension_numbers = #tpu.dot_dimension_numbers<[1], [0], [0], [1], [0, 0, 1, 1], [], []>} : vector<8x4xbf16>, vector<4x512xbf16>, vector<8x512xf32> -> vector<8x512xf32>
    %75 = arith.addf %71, %74 : vector<8x512xf32>
    %c0_26 = arith.constant 0 : index
    %c0_27 = arith.constant 0 : index
    %76 = vector.load %arg9[%c0_26, %c0_27] : memref<8x1xbf16, #tpu.memory_space<vmem>>, vector<8x1xbf16>
    %cst_28 = arith.constant dense<0.000000e+00> : vector<8x512xf32>
    %77 = tpu.matmul %76, %46, %cst_28 {dimension_numbers = #tpu.dot_dimension_numbers<[1], [0], [0], [1], [0, 0, 1, 1], [], []>} : vector<8x1xbf16>, vector<1x512xbf16>, vector<8x512xf32> -> vector<8x512xf32>
    %78 = arith.addf %75, %77 : vector<8x512xf32>
    %cst_29 = arith.constant 0.000000e+00 : f32
    %79 = vector.broadcast %cst_29 : f32 to vector<8x512xf32>
    %80 = arith.maximumf %78, %79 : vector<8x512xf32>
    %81 = arith.truncf %80 : vector<8x512xf32> to vector<8x512xbf16>
    %c17_i32_30 = arith.constant 17 : i32
    %82 = tpu.dynamic_rotate %80 by %c17_i32_30 dim 1 : vector<8x512xf32>, i32 -> vector<8x512xf32>
    %83 = arith.truncf %82 : vector<8x512xf32> to vector<8x512xbf16>
    %84 = vector.broadcast %3 : vector<1x512xbf16> to vector<8x512xbf16>
    %85 = arith.mulf %83, %84 : vector<8x512xbf16>
    %c16_i32_31 = arith.constant 16 : i32
    %86 = tpu.dynamic_rotate %80 by %c16_i32_31 dim 1 : vector<8x512xf32>, i32 -> vector<8x512xf32>
    %87 = arith.truncf %86 : vector<8x512xf32> to vector<8x512xbf16>
    %88 = vector.broadcast %4 : vector<1x512xbf16> to vector<8x512xbf16>
    %89 = arith.mulf %87, %88 : vector<8x512xbf16>
    %c15_i32_32 = arith.constant 15 : i32
    %90 = tpu.dynamic_rotate %80 by %c15_i32_32 dim 1 : vector<8x512xf32>, i32 -> vector<8x512xf32>
    %91 = arith.truncf %90 : vector<8x512xf32> to vector<8x512xbf16>
    %92 = vector.broadcast %5 : vector<1x512xbf16> to vector<8x512xbf16>
    %93 = arith.mulf %91, %92 : vector<8x512xbf16>
    %c1_i32_33 = arith.constant 1 : i32
    %94 = tpu.dynamic_rotate %80 by %c1_i32_33 dim 1 : vector<8x512xf32>, i32 -> vector<8x512xf32>
    %95 = arith.truncf %94 : vector<8x512xf32> to vector<8x512xbf16>
    %96 = vector.broadcast %6 : vector<1x512xbf16> to vector<8x512xbf16>
    %97 = arith.mulf %95, %96 : vector<8x512xbf16>
    %c511_i32_34 = arith.constant 511 : i32
    %98 = tpu.dynamic_rotate %80 by %c511_i32_34 dim 1 : vector<8x512xf32>, i32 -> vector<8x512xf32>
    %99 = arith.truncf %98 : vector<8x512xf32> to vector<8x512xbf16>
    %100 = vector.broadcast %7 : vector<1x512xbf16> to vector<8x512xbf16>
    %101 = arith.mulf %99, %100 : vector<8x512xbf16>
    %c497_i32_35 = arith.constant 497 : i32
    %102 = tpu.dynamic_rotate %80 by %c497_i32_35 dim 1 : vector<8x512xf32>, i32 -> vector<8x512xf32>
    %103 = arith.truncf %102 : vector<8x512xf32> to vector<8x512xbf16>
    %104 = vector.broadcast %8 : vector<1x512xbf16> to vector<8x512xbf16>
    %105 = arith.mulf %103, %104 : vector<8x512xbf16>
    %c496_i32_36 = arith.constant 496 : i32
    %106 = tpu.dynamic_rotate %80 by %c496_i32_36 dim 1 : vector<8x512xf32>, i32 -> vector<8x512xf32>
    %107 = arith.truncf %106 : vector<8x512xf32> to vector<8x512xbf16>
    %108 = vector.broadcast %9 : vector<1x512xbf16> to vector<8x512xbf16>
    %109 = arith.mulf %107, %108 : vector<8x512xbf16>
    %c495_i32_37 = arith.constant 495 : i32
    %110 = tpu.dynamic_rotate %80 by %c495_i32_37 dim 1 : vector<8x512xf32>, i32 -> vector<8x512xf32>
    %111 = arith.truncf %110 : vector<8x512xf32> to vector<8x512xbf16>
    %112 = vector.broadcast %10 : vector<1x512xbf16> to vector<8x512xbf16>
    %113 = arith.mulf %111, %112 : vector<8x512xbf16>
    %114 = tpu.concatenate %85, %89, %93, %97, %81, %101, %105, %109, %113 in 0 : vector<8x512xbf16>, vector<8x512xbf16>, vector<8x512xbf16>, vector<8x512xbf16>, vector<8x512xbf16>, vector<8x512xbf16>, vector<8x512xbf16>, vector<8x512xbf16>, vector<8x512xbf16> -> vector<72x512xbf16>
    %c0_38 = arith.constant 0 : index
    %c0_39 = arith.constant 0 : index
    %115 = vector.load %arg10[%c0_38, %c0_39] : memref<8x72xbf16, #tpu.memory_space<vmem>>, vector<8x72xbf16>
    %cst_40 = arith.constant dense<0.000000e+00> : vector<8x512xf32>
    %116 = tpu.matmul %115, %114, %cst_40 {dimension_numbers = #tpu.dot_dimension_numbers<[1], [0], [0], [1], [0, 0, 1, 1], [], []>} : vector<8x72xbf16>, vector<72x512xbf16>, vector<8x512xf32> -> vector<8x512xf32>
    %cst_41 = arith.constant 0.000000e+00 : f32
    %117 = vector.broadcast %cst_41 : f32 to vector<8x512xf32>
    %118 = arith.maximumf %116, %117 : vector<8x512xf32>
    %119 = arith.truncf %118 : vector<8x512xf32> to vector<8x512xbf16>
    %c0_42 = arith.constant 0 : index
    %c0_43 = arith.constant 0 : index
    %120 = vector.load %arg11[%c0_42, %c0_43] : memref<4x8xbf16, #tpu.memory_space<vmem>>, vector<4x8xbf16>
    %cst_44 = arith.constant dense<0.000000e+00> : vector<4x512xf32>
    %121 = tpu.matmul %120, %119, %cst_44 {dimension_numbers = #tpu.dot_dimension_numbers<[1], [0], [0], [1], [0, 0, 1, 1], [], []>} : vector<4x8xbf16>, vector<8x512xbf16>, vector<4x512xf32> -> vector<4x512xf32>
    %122 = arith.addf %1, %121 : vector<4x512xf32>
    %c0_45 = arith.constant 0 : index
    %c0_46 = arith.constant 0 : index
    %c0_47 = arith.constant 0 : index
    %123 = vector.load %arg12[%c0_45, %c0_46, %c0_47] : memref<1x4x512xf32, #tpu.memory_space<vmem>>, vector<1x4x512xf32>
    %124 = vector.shape_cast %123 : vector<1x4x512xf32> to vector<4x512xf32>
    %125 = vector.shape_cast %122 : vector<4x512xf32> to vector<1x4x512xf32>
    tpu.vector_store %arg12[%c0_45, %c0_46, %c0_47], %125 {strides = array<i32>} : memref<1x4x512xf32, #tpu.memory_space<vmem>>, vector<1x4x512xf32>,
    return
  }
  func.func @transform_0(%arg0: i32) -> (i32, i32, i32) {
    %c0_i32 = arith.constant 0 : i32
    %c0_i32_0 = arith.constant 0 : i32
    %c0_i32_1 = arith.constant 0 : i32
    return %arg0, %c0_i32, %c0_i32_0 : i32, i32, i32
  }
  func.func @transform_1(%arg0: i32) -> (i32, i32) {
    %c0_i32 = arith.constant 0 : i32
    %c0_i32_0 = arith.constant 0 : i32
    %c0_i32_1 = arith.constant 0 : i32
    return %c0_i32, %c0_i32_0 : i32, i32
  }
  func.func @transform_2(%arg0: i32) -> (i32, i32) {
    %c0_i32 = arith.constant 0 : i32
    %c0_i32_0 = arith.constant 0 : i32
    %c0_i32_1 = arith.constant 0 : i32
    return %c0_i32, %c0_i32_0 : i32, i32
  }
  func.func @transform_3(%arg0: i32) -> (i32, i32) {
    %c0_i32 = arith.constant 0 : i32
    %c0_i32_0 = arith.constant 0 : i32
    %c0_i32_1 = arith.constant 0 : i32
    return %c0_i32, %c0_i32_0 : i32, i32
  }
  func.func @transform_4(%arg0: i32) -> (i32, i32) {
    %c0_i32 = arith.constant 0 : i32
    %c0_i32_0 = arith.constant 0 : i32
    %c0_i32_1 = arith.constant 0 : i32
    return %c0_i32, %c0_i32_0 : i32, i32
  }
  func.func @transform_5(%arg0: i32) -> (i32, i32) {
    %c0_i32 = arith.constant 0 : i32
    %c0_i32_0 = arith.constant 0 : i32
    %c0_i32_1 = arith.constant 0 : i32
    return %c0_i32, %c0_i32_0 : i32, i32
  }
  func.func @transform_6(%arg0: i32) -> (i32, i32) {
    %c0_i32 = arith.constant 0 : i32
    %c0_i32_0 = arith.constant 0 : i32
    %c0_i32_1 = arith.constant 0 : i32
    return %c0_i32, %c0_i32_0 : i32, i32
  }
  func.func @transform_7(%arg0: i32) -> (i32, i32) {
    %c0_i32 = arith.constant 0 : i32
    %c0_i32_0 = arith.constant 0 : i32
    %c0_i32_1 = arith.constant 0 : i32
    return %c0_i32, %c0_i32_0 : i32, i32
  }
  func.func @transform_8(%arg0: i32) -> (i32, i32) {
    %c0_i32 = arith.constant 0 : i32
    %c0_i32_0 = arith.constant 0 : i32
    %c0_i32_1 = arith.constant 0 : i32
    return %c0_i32, %c0_i32_0 : i32, i32
  }
  func.func @transform_9(%arg0: i32) -> (i32, i32) {
    %c0_i32 = arith.constant 0 : i32
    %c0_i32_0 = arith.constant 0 : i32
    %c0_i32_1 = arith.constant 0 : i32
    return %c0_i32, %c0_i32_0 : i32, i32
  }
  func.func @transform_10(%arg0: i32) -> (i32, i32) {
    %c0_i32 = arith.constant 0 : i32
    %c0_i32_0 = arith.constant 0 : i32
    %c0_i32_1 = arith.constant 0 : i32
    return %c0_i32, %c0_i32_0 : i32, i32
  }
  func.func @transform_11(%arg0: i32) -> (i32, i32, i32) {
    %c0_i32 = arith.constant 0 : i32
    %c0_i32_0 = arith.constant 0 : i32
    %c0_i32_1 = arith.constant 0 : i32
    return %arg0, %c0_i32, %c0_i32_0 : i32, i32, i32
  }
}

</mosaic_0001>

<llo_original>
// kernel: tpu_custom_call.1
$region0: #{tpu_custom_call.1}
  #allocation0 [shape = 'u32[]', space=smem, size = 0x4, offset = 0x4, fixed_abs, tag = 'smem constant byte address 0x4 - core index']
  #allocation1 [shape = 'u32[144,128]{1,0:T(1,128)}', space=vmem, size = 0x12000, scoped, tag = 'internal scratch']
  %s0 = inlined_call_operand.vmem [shape: f32[1,4,512], index: 0, kind: input, shape index: {}]
  %s1 = inlined_call_operand.hbm [shape: bf16[9,512], index: 1, kind: input, shape index: {}]
  %s2 = inlined_call_operand.vmem [shape: bf16[1,4], index: 2, kind: input, shape index: {}]
  %s3 = inlined_call_operand.vmem [shape: bf16[1,9], index: 3, kind: input, shape index: {}]
  %s4 = inlined_call_operand.vmem [shape: bf16[8,1], index: 4, kind: input, shape index: {}]
  %s5 = inlined_call_operand.vmem [shape: bf16[8,4], index: 5, kind: input, shape index: {}]
  %s6 = inlined_call_operand.vmem [shape: bf16[8,4], index: 6, kind: input, shape index: {}]
  %s7 = inlined_call_operand.vmem [shape: bf16[8,4], index: 7, kind: input, shape index: {}]
  %s8 = inlined_call_operand.vmem [shape: bf16[8,1], index: 8, kind: input, shape index: {}]
  %s9 = inlined_call_operand.vmem [shape: bf16[8,72], index: 9, kind: input, shape index: {}]
  %s10 = inlined_call_operand.vmem [shape: bf16[4,8], index: 10, kind: input, shape index: {}]
  %s11 = inlined_call_operand.hbm [shape: f32[1,4,512], index: 11, kind: output, shape index: {}]
  %s12 = sld [smem:[#allocation0]]
  $region58: #{tpu_custom_call.1} parent=0
    _
  %s14 = ssub.s32 1, %s12
  %s15 = scalar_select 0, %s14, %s12
  $region1: #{tpu_custom_call.1} parent=0
    #allocation2 [shape = 'u8[16384]{0}', space=vmem, size = 0x4000, scoped, tag = 'input window, operand 1, single buffered']
    #allocation3 [shape = 's32[1]{0}', space=sflag, size = 0x4, scoped, tag = 'scoped memory for tpu_custom_call.1']
    #allocation4 [shape = 's32[1]{0}', space=sflag, size = 0x4, scoped, tag = 'scoped memory for tpu_custom_call.1']
    #allocation5 [shape = 'u8[8192]{0}', space=vmem, size = 0x2000, scoped, tag = 'output window, operand 0, single buffered']
    %16 = vsyncpa [#allocation3], 0
    %17 = vsyncpa [#allocation4], 0
    // Predicated region
    $region2: #{tpu_custom_call.1} parent=1 // pred_check
      _
    $region3: #{tpu_custom_call.1} parent=1 // pred_check_branch
      %19 = sbr.rel (0) target = $region5
    $region4: #{tpu_custom_call.1} parent=1 // pred_region
      _
    $region5: #{tpu_custom_call.1} parent=1 // pred_fallthru
      _
    // Predicated region
    $region6: #{tpu_custom_call.1} parent=1 // pred_check
      _
    $region7: #{tpu_custom_call.1} parent=1 // pred_check_branch
      %21 = sbr.rel (0) target = $region9
    $region8: #{tpu_custom_call.1} parent=1 // pred_region
      %s23 = ssub.s32 512, 512
      %24 = vsyncadd [#allocation3], %s23
      %s25 = sshll.u32 [#allocation2], 4
      %s26 = int_to_ptr.vmem [resolvable:$true] %s25
      %31 = dma.hbm_to_vmem [thread:$0]  %s1, 512, %s26, [#allocation3], 256, 256, 16
    $region9: #{tpu_custom_call.1} parent=1 // pred_fallthru
      _
    // Predicated region
    $region10: #{tpu_custom_call.1} parent=1 // pred_check
      _
    $region11: #{tpu_custom_call.1} parent=1 // pred_check_branch
      %33 = sbr.rel (0) target = $region13
    $region12: #{tpu_custom_call.1} parent=1 // pred_region
      _
    $region13: #{tpu_custom_call.1} parent=1 // pred_fallthru
      _
    // Predicated region
    $region14: #{tpu_custom_call.1} parent=1 // pred_check
      _
    $region15: #{tpu_custom_call.1} parent=1 // pred_check_branch
      %35 = sbr.rel (0) target = $region17
    $region16: #{tpu_custom_call.1} parent=1 // pred_region
      _
    $region17: #{tpu_custom_call.1} parent=1 // pred_fallthru
      _
    // Predicated region
    $region18: #{tpu_custom_call.1} parent=1 // pred_check
      _
    $region19: #{tpu_custom_call.1} parent=1 // pred_check_branch
      %37 = sbr.rel (0) target = $region21
    $region20: #{tpu_custom_call.1} parent=1 // pred_region
      _
    $region21: #{tpu_custom_call.1} parent=1 // pred_fallthru
      _
    // Predicated region
    $region22: #{tpu_custom_call.1} parent=1 // pred_check
      _
    $region23: #{tpu_custom_call.1} parent=1 // pred_check_branch
      %39 = sbr.rel (0) target = $region25
    $region24: #{tpu_custom_call.1} parent=1 // pred_region
      _
    $region25: #{tpu_custom_call.1} parent=1 // pred_fallthru
      _
    // Predicated region
    $region26: #{tpu_custom_call.1} parent=1 // pred_check
      _
    $region27: #{tpu_custom_call.1} parent=1 // pred_check_branch
      %41 = sbr.rel (0) target = $region29
    $region28: #{tpu_custom_call.1} parent=1 // pred_region
      _
    $region29: #{tpu_custom_call.1} parent=1 // pred_fallthru
      _
    // Predicated region
    $region30: #{tpu_custom_call.1} parent=1 // pred_check
      _
    $region31: #{tpu_custom_call.1} parent=1 // pred_check_branch
      %43 = sbr.rel (0) target = $region33
    $region32: #{tpu_custom_call.1} parent=1 // pred_region
      _
    $region33: #{tpu_custom_call.1} parent=1 // pred_fallthru
      _
    // Predicated region
    $region34: #{tpu_custom_call.1} parent=1 // pred_check
      _
    $region35: #{tpu_custom_call.1} parent=1 // pred_check_branch
      %45 = sbr.rel (0) target = $region37
    $region36: #{tpu_custom_call.1} parent=1 // pred_region
      _
    $region37: #{tpu_custom_call.1} parent=1 // pred_fallthru
      _
    // Predicated region
    $region38: #{tpu_custom_call.1} parent=1 // pred_check
      _
    $region39: #{tpu_custom_call.1} parent=1 // pred_check_branch
      %47 = sbr.rel (0) target = $region41
    $region40: #{tpu_custom_call.1} parent=1 // pred_region
      _
    $region41: #{tpu_custom_call.1} parent=1 // pred_fallthru
      _
    // Predicated region
    $region42: #{tpu_custom_call.1} parent=1 // pred_check
      _
    $region43: #{tpu_custom_call.1} parent=1 // pred_check_branch
      %49 = sbr.rel (0) target = $region45
    $region44: #{tpu_custom_call.1} parent=1 // pred_region
      _
    $region45: #{tpu_custom_call.1} parent=1 // pred_fallthru
      _
    // Predicated region
    $region46: #{tpu_custom_call.1} parent=1 // pred_check
      _
    $region47: #{tpu_custom_call.1} parent=1 // pred_check_branch
      %51 = sbr.rel (0) target = $region49
    $region48: #{tpu_custom_call.1} parent=1 // pred_region
      %52 = dma.done [#allocation3], 512
    $region49: #{tpu_custom_call.1} parent=1 // pred_fallthru
      _
    %v54 = vld [vmem:[%s0] sm:$0xff]
    %v55 = vld [vmem:[%s0 + $0x8] sm:$0xff]
    %v56 = vld [vmem:[#allocation2] sm:$0xff]
    %v57 = vld [vmem:[#allocation2 + $0x8] sm:$0xff]
    %v58 = vld [vmem:[#allocation2 + $0x10] sm:$0x11]
    %v59 = vld [vmem:[#allocation2 + $0x18] sm:$0x11]
    %v62 = vcombine.high %v54, %v54
    %v63 = vcombine.high %v55, %v55
    %v66 = vpack.c.bf16 %v54, %v54
    %v67 = vpack.c.bf16 %v62, %v62
    %v68 = vpack.c.bf16 %v55, %v55
    %v69 = vpack.c.bf16 %v63, %v63
    %v70 = vld [vmem:[%s2] sm:$0x1]
    %vm71 = vcmask 31744
    %v73 = vsel %vm71, %v70, 0
    %vm75 = vcmask 1041408
    %v77 = vsel %vm75, %v66, 0
    %v80 = vsel %vm75, %v67, 0
    %v83 = vsel %vm75, %v68, 0
    %v86 = vsel %vm75, %v69, 0
    %88 = vmatprep.subr.bf16.mxu0 %v80
    %89 = vmatpush1.bf16.msra.mxu0 %v77
    %90 = vmatprep.subr.bf16.mxu0 0
    %91 = vmatpush1.bf16.msra.mxu0 0
    %92 = vmatprep.subr.bf16.mxu0 0
    %93 = vmatpush1.bf16.msra.mxu0 0
    %94 = vmatprep.subr.bf16.mxu0 0
    %95 = vmatpush1.bf16.msra.mxu0 0
    %96 = vmatprep.subr.bf16.mxu0 0
    %97 = vmatpush1.bf16.msra.mxu0 0
    %98 = vmatprep.subr.bf16.mxu0 0
    %99 = vmatpush1.bf16.msra.mxu0 0
    %100 = vmatprep.subr.bf16.mxu0 0
    %101 = vmatpush1.bf16.msra.mxu0 0
    %102 = vmatprep.subr.bf16.mxu0 0
    %103 = vmatpush1.bf16.msra.mxu0 0
    %104 = vmatprep.subr.bf16.mxu0 0
    %105 = vmatpush1.bf16.msra.mxu0 0
    %106 = vmatprep.subr.bf16.mxu0 0
    %107 = vmatpush1.bf16.msra.mxu0 0
    %108 = vmatprep.subr.bf16.mxu0 0
    %109 = vmatpush1.bf16.msra.mxu0 0
    %110 = vmatprep.subr.bf16.mxu0 0
    %111 = vmatpush1.bf16.msra.mxu0 0
    %112 = vmatprep.subr.bf16.mxu0 0
    %113 = vmatpush1.bf16.msra.mxu0 0
    %114 = vmatprep.subr.bf16.mxu0 0
    %115 = vmatpush1.bf16.msra.mxu0 0
    %116 = vmatprep.subr.bf16.mxu0 0
    %117 = vmatpush1.bf16.msra.mxu0 0
    %118 = vmatprep.subr.bf16.mxu0 0
    %119 = vmatpush1.bf16.msra.mxu0 0
    %120 = vmatprep.mubr.bf16.mxu0 0
    %121 = vmatmul.mubr.bf16.gmra.mrb[0].mxu0 %v73
    %v122 = vpop.f32.mrb[0].mxu0
    %v123 = vadd.f32 0.0, %v122
    %v124 = vpop.f32.mrb[0].mxu0
    %v125 = vadd.f32 0.0, %v124
    %v126 = vpop.f32.mrb[0].mxu0
    %v127 = vpop.f32.mrb[0].mxu0
    %128 = vdwg.mxu0
    %129 = vmatprep.subr.bf16.mxu0 %v86
    %130 = vmatpush1.bf16.msra.mxu0 %v83
    %131 = vmatprep.subr.bf16.mxu0 0
    %132 = vmatpush1.bf16.msra.mxu0 0
    %133 = vmatprep.subr.bf16.mxu0 0
    %134 = vmatpush1.bf16.msra.mxu0 0
    %135 = vmatprep.subr.bf16.mxu0 0
    %136 = vmatpush1.bf16.msra.mxu0 0
    %137 = vmatprep.subr.bf16.mxu0 0
    %138 = vmatpush1.bf16.msra.mxu0 0
    %139 = vmatprep.subr.bf16.mxu0 0
    %140 = vmatpush1.bf16.msra.mxu0 0
    %141 = vmatprep.subr.bf16.mxu0 0
    %142 = vmatpush1.bf16.msra.mxu0 0
    %143 = vmatprep.subr.bf16.mxu0 0
    %144 = vmatpush1.bf16.msra.mxu0 0
    %145 = vmatprep.subr.bf16.mxu0 0
    %146 = vmatpush1.bf16.msra.mxu0 0
    %147 = vmatprep.subr.bf16.mxu0 0
    %148 = vmatpush1.bf16.msra.mxu0 0
    %149 = vmatprep.subr.bf16.mxu0 0
    %150 = vmatpush1.bf16.msra.mxu0 0
    %151 = vmatprep.subr.bf16.mxu0 0
    %152 = vmatpush1.bf16.msra.mxu0 0
    %153 = vmatprep.subr.bf16.mxu0 0
    %154 = vmatpush1.bf16.msra.mxu0 0
    %155 = vmatprep.subr.bf16.mxu0 0
    %156 = vmatpush1.bf16.msra.mxu0 0
    %157 = vmatprep.subr.bf16.mxu0 0
    %158 = vmatpush1.bf16.msra.mxu0 0
    %159 = vmatprep.subr.bf16.mxu0 0
    %160 = vmatpush1.bf16.msra.mxu0 0
    %161 = vmatprep.mubr.bf16.mxu0 0
    %162 = vmatmul.mubr.bf16.gmra.mrb[0].mxu0 %v73
    %v163 = vpop.f32.mrb[0].mxu0
    %v164 = vadd.f32 0.0, %v163
    %v165 = vpop.f32.mrb[0].mxu0
    %v166 = vadd.f32 0.0, %v165
    %v167 = vpop.f32.mrb[0].mxu0
    %v168 = vpop.f32.mrb[0].mxu0
    %169 = vdwg.mxu0
    %v170 = vmax.f32 %v123, 0.0
    %v171 = vmax.f32 %v125, 0.0
    %v172 = vmax.f32 %v164, 0.0
    %v173 = vmax.f32 %v166, 0.0
    %v174 = vpack.c.bf16 %v170, %v170
    %v175 = vpack.c.bf16 %v171, %v171
    %v176 = vpack.c.bf16 %v172, %v172
    %v177 = vpack.c.bf16 %v173, %v173
    %178 = vrot.lane.b32.xlu0 %v170, 17
    %v179 = vpop.permute.xlu0 %178
    %180 = vrot.lane.b32.xlu0 %v171, 17
    %v181 = vpop.permute.xlu0 %180
    %182 = vrot.lane.b32.xlu0 %v172, 17
    %v183 = vpop.permute.xlu0 %182
    %184 = vrot.lane.b32.xlu0 %v173, 17
    %v185 = vpop.permute.xlu0 %184
    %v186 = vlaneseq
    %v187 = vand.u32 %v186, 127
    %vm188 = vcmp.lt.s32.totalorder %v187, 17
    %v189 = vsel %vm188, %v183, %v185
    %v190 = vsel %vm188, %v181, %v183
    %v191 = vsel %vm188, %v179, %v181
    %v192 = vsel %vm188, %v185, %v179
    %v193 = vpack.c.bf16 %v192, %v192
    %v194 = vpack.c.bf16 %v191, %v191
    %v195 = vpack.c.bf16 %v190, %v190
    %v196 = vpack.c.bf16 %v189, %v189
    %v199 = vunpack.c.l.b16 %v56
    %v200 = vunpack.c.h.b16 %v56
    %v201 = vunpack.c.l.b16 %v57
    %v202 = vunpack.c.h.b16 %v57
    %v203 = vpack.c.b16 %v199, %v199
    %v204 = vpack.c.b16 %v200, %v200
    %v205 = vpack.c.b16 %v201, %v201
    %v206 = vpack.c.b16 %v202, %v202
    %v211 = vmul.bf16 %v193, %v203
    %v212 = vmul.bf16 %v194, %v204
    %v213 = vmul.bf16 %v195, %v205
    %v214 = vmul.bf16 %v196, %v206
    %215 = vrot.lane.b32.xlu0 %v170, 16
    %v216 = vpop.permute.xlu0 %215
    %217 = vrot.lane.b32.xlu0 %v171, 16
    %v218 = vpop.permute.xlu0 %217
    %219 = vrot.lane.b32.xlu0 %v172, 16
    %v220 = vpop.permute.xlu0 %219
    %221 = vrot.lane.b32.xlu0 %v173, 16
    %v222 = vpop.permute.xlu0 %221
    %vm223 = vcmp.lt.s32.totalorder %v187, 16
    %v224 = vsel %vm223, %v220, %v222
    %v225 = vsel %vm223, %v218, %v220
    %v226 = vsel %vm223, %v216, %v218
    %v227 = vsel %vm223, %v222, %v216
    %v228 = vpack.c.bf16 %v227, %v227
    %v229 = vpack.c.bf16 %v226, %v226
    %v230 = vpack.c.bf16 %v225, %v225
    %v231 = vpack.c.bf16 %v224, %v224
    %v233 = vshrl.u32 %v203, 16
    %v236 = vshrl.u32 %v204, 16
    %v239 = vshrl.u32 %v205, 16
    %v242 = vshrl.u32 %v206, 16
    %v248 = vmul.bf16 %v228, %v233
    %v249 = vmul.bf16 %v229, %v236
    %v250 = vmul.bf16 %v230, %v239
    %v251 = vmul.bf16 %v231, %v242
    %252 = vrot.lane.b32.xlu0 %v170, 15
    %v253 = vpop.permute.xlu0 %252
    %254 = vrot.lane.b32.xlu0 %v171, 15
    %v255 = vpop.permute.xlu0 %254
    %256 = vrot.lane.b32.xlu0 %v172, 15
    %v257 = vpop.permute.xlu0 %256
    %258 = vrot.lane.b32.xlu0 %v173, 15
    %v259 = vpop.permute.xlu0 %258
    %vm260 = vcmp.lt.s32.totalorder %v187, 15
    %v261 = vsel %vm260, %v257, %v259
    %v262 = vsel %vm260, %v255, %v257
    %v263 = vsel %vm260, %v253, %v255
    %v264 = vsel %vm260, %v259, %v253
    %v265 = vpack.c.bf16 %v264, %v264
    %v266 = vpack.c.bf16 %v263, %v263
    %v267 = vpack.c.bf16 %v262, %v262
    %v268 = vpack.c.bf16 %v261, %v261
    %v269 = vrot.slane %v203, 1
    %v270 = vrot.slane %v204, 1
    %v271 = vrot.slane %v205, 1
    %v272 = vrot.slane %v206, 1
    %v277 = vmul.bf16 %v265, %v269
    %v278 = vmul.bf16 %v266, %v270
    %v279 = vmul.bf16 %v267, %v271
    %v280 = vmul.bf16 %v268, %v272
    %281 = vrot.lane.b32.xlu0 %v170, 1
    %v282 = vpop.permute.xlu0 %281
    %283 = vrot.lane.b32.xlu0 %v171, 1
    %v284 = vpop.permute.xlu0 %283
    %285 = vrot.lane.b32.xlu0 %v172, 1
    %v286 = vpop.permute.xlu0 %285
    %287 = vrot.lane.b32.xlu0 %v173, 1
    %v288 = vpop.permute.xlu0 %287
    %vm289 = vcmp.lt.s32.totalorder %v187, 1
    %v290 = vsel %vm289, %v286, %v288
    %v291 = vsel %vm289, %v284, %v286
    %v292 = vsel %vm289, %v282, %v284
    %v293 = vsel %vm289, %v288, %v282
    %v294 = vpack.c.bf16 %v293, %v293
    %v295 = vpack.c.bf16 %v292, %v292
    %v296 = vpack.c.bf16 %v291, %v291
    %v297 = vpack.c.bf16 %v290, %v290
    %v298 = vrot.slane %v233, 1
    %v299 = vrot.slane %v236, 1
    %v300 = vrot.slane %v239, 1
    %v301 = vrot.slane %v242, 1
    %v306 = vmul.bf16 %v294, %v298
    %v307 = vmul.bf16 %v295, %v299
    %v308 = vmul.bf16 %v296, %v300
    %v309 = vmul.bf16 %v297, %v301
    %310 = vrot.lane.b32.xlu0 %v170, 127
    %v311 = vpop.permute.xlu0 %310
    %312 = vrot.lane.b32.xlu0 %v171, 127
    %v313 = vpop.permute.xlu0 %312
    %314 = vrot.lane.b32.xlu0 %v172, 127
    %v315 = vpop.permute.xlu0 %314
    %316 = vrot.lane.b32.xlu0 %v173, 127
    %v317 = vpop.permute.xlu0 %316
    %vm318 = vcmp.lt.s32.totalorder %v187, 127
    %v319 = vsel %vm318, %v315, %v317
    %v320 = vsel %vm318, %v313, %v315
    %v321 = vsel %vm318, %v311, %v313
    %v322 = vsel %vm318, %v317, %v311
    %v323 = vpack.c.bf16 %v321, %v321
    %v324 = vpack.c.bf16 %v320, %v320
    %v325 = vpack.c.bf16 %v319, %v319
    %v326 = vpack.c.bf16 %v322, %v322
    %v327 = vrot.slane %v233, 2
    %v328 = vrot.slane %v236, 2
    %v329 = vrot.slane %v239, 2
    %v330 = vrot.slane %v242, 2
    %v335 = vmul.bf16 %v323, %v327
    %v336 = vmul.bf16 %v324, %v328
    %v337 = vmul.bf16 %v325, %v329
    %v338 = vmul.bf16 %v326, %v330
    %339 = vrot.lane.b32.xlu0 %v170, 113
    %v340 = vpop.permute.xlu0 %339
    %341 = vrot.lane.b32.xlu0 %v171, 113
    %v342 = vpop.permute.xlu0 %341
    %343 = vrot.lane.b32.xlu0 %v172, 113
    %v344 = vpop.permute.xlu0 %343
    %345 = vrot.lane.b32.xlu0 %v173, 113
    %v346 = vpop.permute.xlu0 %345
    %vm347 = vcmp.lt.s32.totalorder %v187, 113
    %v348 = vsel %vm347, %v344, %v346
    %v349 = vsel %vm347, %v342, %v344
    %v350 = vsel %vm347, %v340, %v342
    %v351 = vsel %vm347, %v346, %v340
    %v352 = vpack.c.bf16 %v350, %v350
    %v353 = vpack.c.bf16 %v349, %v349
    %v354 = vpack.c.bf16 %v348, %v348
    %v355 = vpack.c.bf16 %v351, %v351
    %v356 = vrot.slane %v203, 3
    %v357 = vrot.slane %v204, 3
    %v358 = vrot.slane %v205, 3
    %v359 = vrot.slane %v206, 3
    %v364 = vmul.bf16 %v352, %v356
    %v365 = vmul.bf16 %v353, %v357
    %v366 = vmul.bf16 %v354, %v358
    %v367 = vmul.bf16 %v355, %v359
    %368 = vrot.lane.b32.xlu0 %v170, 112
    %v369 = vpop.permute.xlu0 %368
    %370 = vrot.lane.b32.xlu0 %v171, 112
    %v371 = vpop.permute.xlu0 %370
    %372 = vrot.lane.b32.xlu0 %v172, 112
    %v373 = vpop.permute.xlu0 %372
    %374 = vrot.lane.b32.xlu0 %v173, 112
    %v375 = vpop.permute.xlu0 %374
    %vm376 = vcmp.lt.s32.totalorder %v187, 112
    %v377 = vsel %vm376, %v373, %v375
    %v378 = vsel %vm376, %v371, %v373
    %v379 = vsel %vm376, %v369, %v371
    %v380 = vsel %vm376, %v375, %v369
    %v381 = vpack.c.bf16 %v379, %v379
    %v382 = vpack.c.bf16 %v378, %v378
    %v383 = vpack.c.bf16 %v377, %v377
    %v384 = vpack.c.bf16 %v380, %v380
    %v385 = vrot.slane %v233, 3
    %v386 = vrot.slane %v236, 3
    %v387 = vrot.slane %v239, 3
    %v388 = vrot.slane %v242, 3
    %v393 = vmul.bf16 %v381, %v385
    %v394 = vmul.bf16 %v382, %v386
    %v395 = vmul.bf16 %v383, %v387
    %v396 = vmul.bf16 %v384, %v388
    %397 = vrot.lane.b32.xlu0 %v170, 111
    %v398 = vpop.permute.xlu0 %397
    %399 = vrot.lane.b32.xlu0 %v171, 111
    %v400 = vpop.permute.xlu0 %399
    %401 = vrot.lane.b32.xlu0 %v172, 111
    %v402 = vpop.permute.xlu0 %401
    %403 = vrot.lane.b32.xlu0 %v173, 111
    %v404 = vpop.permute.xlu0 %403
    %vm405 = vcmp.lt.s32.totalorder %v187, 111
    %v406 = vsel %vm405, %v402, %v404
    %v407 = vsel %vm405, %v400, %v402
    %v408 = vsel %vm405, %v398, %v400
    %v409 = vsel %vm405, %v404, %v398
    %v410 = vpack.c.bf16 %v408, %v408
    %v411 = vpack.c.bf16 %v407, %v407
    %v412 = vpack.c.bf16 %v406, %v406
    %v413 = vpack.c.bf16 %v409, %v409
    %v416 = vunpack.c.l.b16 %v58
    %v417 = vunpack.c.h.b16 %v58
    %v418 = vunpack.c.l.b16 %v59
    %v419 = vunpack.c.h.b16 %v59
    %v420 = vpack.c.b16 %v416, %v416
    %v421 = vpack.c.b16 %v417, %v417
    %v422 = vpack.c.b16 %v418, %v418
    %v423 = vpack.c.b16 %v419, %v419
    %v428 = vmul.bf16 %v410, %v420
    %v429 = vmul.bf16 %v411, %v421
    %v430 = vmul.bf16 %v412, %v422
    %v431 = vmul.bf16 %v413, %v423
    %v433 = vshll.u32 %v248, 16
    %v436 = vshll.u32 %v249, 16
    %v439 = vshll.u32 %v250, 16
    %v442 = vshll.u32 %v251, 16
    %v452 = vrot.slane %v277, 7
    %v453 = vrot.slane %v278, 7
    %v454 = vrot.slane %v279, 7
    %v455 = vrot.slane %v280, 7
    %v457 = vshll.u32 %v306, 16
    %v459 = vrot.slane %v457, 7
    %v461 = vshll.u32 %v307, 16
    %v463 = vrot.slane %v461, 7
    %v465 = vshll.u32 %v308, 16
    %v467 = vrot.slane %v465, 7
    %v469 = vshll.u32 %v309, 16
    %v471 = vrot.slane %v469, 7
    %v480 = vrot.slane %v174, 6
    %v481 = vrot.slane %v175, 6
    %v482 = vrot.slane %v176, 6
    %v483 = vrot.slane %v177, 6
    %v485 = vshll.u32 %v335, 16
    %v487 = vrot.slane %v485, 6
    %v489 = vshll.u32 %v336, 16
    %v491 = vrot.slane %v489, 6
    %v493 = vshll.u32 %v337, 16
    %v495 = vrot.slane %v493, 6
    %v497 = vshll.u32 %v338, 16
    %v499 = vrot.slane %v497, 6
    %v508 = vrot.slane %v364, 5
    %v509 = vrot.slane %v365, 5
    %v510 = vrot.slane %v366, 5
    %v511 = vrot.slane %v367, 5
    %v513 = vshll.u32 %v393, 16
    %v515 = vrot.slane %v513, 5
    %v517 = vshll.u32 %v394, 16
    %v519 = vrot.slane %v517, 5
    %v521 = vshll.u32 %v395, 16
    %v523 = vrot.slane %v521, 5
    %v525 = vshll.u32 %v396, 16
    %v527 = vrot.slane %v525, 5
    %v536 = vrot.slane %v428, 4
    %v537 = vrot.slane %v429, 4
    %v538 = vrot.slane %v430, 4
    %v539 = vrot.slane %v431, 4
    %vm540 = vcmask 1040384
    %vm541 = vsmask.f32 256
    %vm542 = vmand %vm540, %vm541
    %v543 = vsel %vm542, %v211, %v433
    %v544 = vsel %vm542, %v212, %v436
    %v545 = vsel %vm542, %v213, %v439
    %v546 = vsel %vm542, %v214, %v442
    %vm547 = vcmask 1040384
    %v550 = vsel %vm547, %v543, %v452
    %v554 = vsel %vm547, %v544, %v453
    %v558 = vsel %vm547, %v545, %v454
    %v562 = vsel %vm547, %v546, %v455
    %vm564 = vcmask 1041408
    %vm565 = vsmask.f32 1280
    %vm566 = vmand %vm564, %vm565
    %v567 = vsel %vm566, %v550, %v459
    %v568 = vsel %vm566, %v554, %v463
    %v569 = vsel %vm566, %v558, %v467
    %v570 = vsel %vm566, %v562, %v471
    %v573 = vsel %vm75, %v567, %v480
    %v577 = vsel %vm75, %v568, %v481
    %v581 = vsel %vm75, %v569, %v482
    %v585 = vsel %vm75, %v570, %v483
    %vm587 = vcmask 1042432
    %vm588 = vsmask.f32 2304
    %vm589 = vmand %vm587, %vm588
    %v590 = vsel %vm589, %v573, %v487
    %v591 = vsel %vm589, %v577, %v491
    %v592 = vsel %vm589, %v581, %v495
    %v593 = vsel %vm589, %v585, %v499
    %vm594 = vcmask 1042432
    %v597 = vsel %vm594, %v590, %v508
    %v601 = vsel %vm594, %v591, %v509
    %v605 = vsel %vm594, %v592, %v510
    %v609 = vsel %vm594, %v593, %v511
    %vm611 = vcmask 1043456
    %vm612 = vsmask.f32 3328
    %vm613 = vmand %vm611, %vm612
    %v614 = vsel %vm613, %v597, %v515
    %v615 = vsel %vm613, %v601, %v519
    %v616 = vsel %vm613, %v605, %v523
    %v617 = vsel %vm613, %v609, %v527
    %vm618 = vcmask 1043456
    %v621 = vsel %vm618, %v614, %v536
    %v624 = vsel %vm618, %v615, %v537
    %v627 = vsel %vm618, %v616, %v538
    %v630 = vsel %vm618, %v617, %v539
    %v631 = vld [vmem:[%s3] sm:$0x1]
    %vm632 = vcmask 72704
    %v634 = vsel %vm632, %v631, 0
    %vm636 = vcmask 1044480
    %v637 = vsel %vm618, 4294967295, 65535
    %v638 = vsel %vm636, %v637, 0
    %v639 = vand.u32 %v621, %v638
    %v641 = vand.u32 %v624, %v638
    %v643 = vand.u32 %v627, %v638
    %v645 = vand.u32 %v630, %v638
    %647 = vmatprep.subr.bf16.mxu0 %v641
    %648 = vmatpush1.bf16.msra.mxu0 %v639
    %649 = vmatprep.subr.bf16.mxu0 0
    %650 = vmatpush1.bf16.msra.mxu0 0
    %651 = vmatprep.subr.bf16.mxu0 0
    %652 = vmatpush1.bf16.msra.mxu0 0
    %653 = vmatprep.subr.bf16.mxu0 0
    %654 = vmatpush1.bf16.msra.mxu0 0
    %655 = vmatprep.subr.bf16.mxu0 0
    %656 = vmatpush1.bf16.msra.mxu0 0
    %657 = vmatprep.subr.bf16.mxu0 0
    %658 = vmatpush1.bf16.msra.mxu0 0
    %659 = vmatprep.subr.bf16.mxu0 0
    %660 = vmatpush1.bf16.msra.mxu0 0
    %661 = vmatprep.subr.bf16.mxu0 0
    %662 = vmatpush1.bf16.msra.mxu0 0
    %663 = vmatprep.subr.bf16.mxu0 0
    %664 = vmatpush1.bf16.msra.mxu0 0
    %665 = vmatprep.subr.bf16.mxu0 0
    %666 = vmatpush1.bf16.msra.mxu0 0
    %667 = vmatprep.subr.bf16.mxu0 0
    %668 = vmatpush1.bf16.msra.mxu0 0
    %669 = vmatprep.subr.bf16.mxu0 0
    %670 = vmatpush1.bf16.msra.mxu0 0
    %671 = vmatprep.subr.bf16.mxu0 0
    %672 = vmatpush1.bf16.msra.mxu0 0
    %673 = vmatprep.subr.bf16.mxu0 0
    %674 = vmatpush1.bf16.msra.mxu0 0
    %675 = vmatprep.subr.bf16.mxu0 0
    %676 = vmatpush1.bf16.msra.mxu0 0
    %677 = vmatprep.subr.bf16.mxu0 0
    %678 = vmatpush1.bf16.msra.mxu0 0
    %679 = vmatprep.mubr.bf16.mxu0 0
    %680 = vmatmul.mubr.bf16.gmra.mrb[0].mxu0 %v634
    %v681 = vpop.f32.mrb[0].mxu0
    %v682 = vadd.f32 0.0, %v681
    %v683 = vpop.f32.mrb[0].mxu0
    %v684 = vadd.f32 0.0, %v683
    %v685 = vpop.f32.mrb[0].mxu0
    %v686 = vpop.f32.mrb[0].mxu0
    %687 = vdwg.mxu0
    %688 = vmatprep.subr.bf16.mxu0 %v645
    %689 = vmatpush1.bf16.msra.mxu0 %v643
    %690 = vmatprep.subr.bf16.mxu0 0
    %691 = vmatpush1.bf16.msra.mxu0 0
    %692 = vmatprep.subr.bf16.mxu0 0
    %693 = vmatpush1.bf16.msra.mxu0 0
    %694 = vmatprep.subr.bf16.mxu0 0
    %695 = vmatpush1.bf16.msra.mxu0 0
    %696 = vmatprep.subr.bf16.mxu0 0
    %697 = vmatpush1.bf16.msra.mxu0 0
    %698 = vmatprep.subr.bf16.mxu0 0
    %699 = vmatpush1.bf16.msra.mxu0 0
    %700 = vmatprep.subr.bf16.mxu0 0
    %701 = vmatpush1.bf16.msra.mxu0 0
    %702 = vmatprep.subr.bf16.mxu0 0
    %703 = vmatpush1.bf16.msra.mxu0 0
    %704 = vmatprep.subr.bf16.mxu0 0
    %705 = vmatpush1.bf16.msra.mxu0 0
    %706 = vmatprep.subr.bf16.mxu0 0
    %707 = vmatpush1.bf16.msra.mxu0 0
    %708 = vmatprep.subr.bf16.mxu0 0
    %709 = vmatpush1.bf16.msra.mxu0 0
    %710 = vmatprep.subr.bf16.mxu0 0
    %711 = vmatpush1.bf16.msra.mxu0 0
    %712 = vmatprep.subr.bf16.mxu0 0
    %713 = vmatpush1.bf16.msra.mxu0 0
    %714 = vmatprep.subr.bf16.mxu0 0
    %715 = vmatpush1.bf16.msra.mxu0 0
    %716 = vmatprep.subr.bf16.mxu0 0
    %717 = vmatpush1.bf16.msra.mxu0 0
    %718 = vmatprep.subr.bf16.mxu0 0
    %719 = vmatpush1.bf16.msra.mxu0 0
    %720 = vmatprep.mubr.bf16.mxu0 0
    %721 = vmatmul.mubr.bf16.gmra.mrb[0].mxu0 %v634
    %v722 = vpop.f32.mrb[0].mxu0
    %v723 = vadd.f32 0.0, %v722
    %v724 = vpop.f32.mrb[0].mxu0
    %v725 = vadd.f32 0.0, %v724
    %v726 = vpop.f32.mrb[0].mxu0
    %v727 = vpop.f32.mrb[0].mxu0
    %728 = vdwg.mxu0
    %v729 = vmax.f32 %v682, 0.0
    %v730 = vmax.f32 %v684, 0.0
    %v731 = vmax.f32 %v723, 0.0
    %v732 = vmax.f32 %v725, 0.0
    %v733 = vpack.c.bf16 %v729, %v729
    %v734 = vpack.c.bf16 %v730, %v730
    %v735 = vpack.c.bf16 %v731, %v731
    %v736 = vpack.c.bf16 %v732, %v732
    %v737 = vld [vmem:[%s4] sm:$0xf]
    %vm738 = vcmask 7168
    %v740 = vsel %vm738, %v737, 0
    %v742 = vsel 0, 4294967295, 65535
    %v743 = vsel %vm547, %v742, 0
    %v745 = vand.u32 %v733, %v743
    %v748 = vand.u32 %v734, %v743
    %v751 = vand.u32 %v735, %v743
    %v754 = vand.u32 %v736, %v743
    %756 = vmatprep.subr.bf16.mxu0 %v748
    %757 = vmatpush1.bf16.msra.mxu0 %v745
    %758 = vmatprep.subr.bf16.mxu0 0
    %759 = vmatpush1.bf16.msra.mxu0 0
    %760 = vmatprep.subr.bf16.mxu0 0
    %761 = vmatpush1.bf16.msra.mxu0 0
    %762 = vmatprep.subr.bf16.mxu0 0
    %763 = vmatpush1.bf16.msra.mxu0 0
    %764 = vmatprep.subr.bf16.mxu0 0
    %765 = vmatpush1.bf16.msra.mxu0 0
    %766 = vmatprep.subr.bf16.mxu0 0
    %767 = vmatpush1.bf16.msra.mxu0 0
    %768 = vmatprep.subr.bf16.mxu0 0
    %769 = vmatpush1.bf16.msra.mxu0 0
    %770 = vmatprep.subr.bf16.mxu0 0
    %771 = vmatpush1.bf16.msra.mxu0 0
    %772 = vmatprep.subr.bf16.mxu0 0
    %773 = vmatpush1.bf16.msra.mxu0 0
    %774 = vmatprep.subr.bf16.mxu0 0
    %775 = vmatpush1.bf16.msra.mxu0 0
    %776 = vmatprep.subr.bf16.mxu0 0
    %777 = vmatpush1.bf16.msra.mxu0 0
    %778 = vmatprep.subr.bf16.mxu0 0
    %779 = vmatpush1.bf16.msra.mxu0 0
    %780 = vmatprep.subr.bf16.mxu0 0
    %781 = vmatpush1.bf16.msra.mxu0 0
    %782 = vmatprep.subr.bf16.mxu0 0
    %783 = vmatpush1.bf16.msra.mxu0 0
    %784 = vmatprep.subr.bf16.mxu0 0
    %785 = vmatpush1.bf16.msra.mxu0 0
    %786 = vmatprep.subr.bf16.mxu0 0
    %787 = vmatpush1.bf16.msra.mxu0 0
    %788 = vmatprep.mubr.bf16.mxu0 0
    %789 = vmatmul.mubr.bf16.gmra.mrb[0].mxu0 %v740
    %v790 = vpop.f32.mrb[0].mxu0
    %v791 = vadd.f32 0.0, %v790
    %v792 = vpop.f32.mrb[0].mxu0
    %v793 = vadd.f32 0.0, %v792
    %v794 = vpop.f32.mrb[0].mxu0
    %v795 = vpop.f32.mrb[0].mxu0
    %796 = vdwg.mxu0
    %797 = vmatprep.subr.bf16.mxu0 %v754
    %798 = vmatpush1.bf16.msra.mxu0 %v751
    %799 = vmatprep.subr.bf16.mxu0 0
    %800 = vmatpush1.bf16.msra.mxu0 0
    %801 = vmatprep.subr.bf16.mxu0 0
    %802 = vmatpush1.bf16.msra.mxu0 0
    %803 = vmatprep.subr.bf16.mxu0 0
    %804 = vmatpush1.bf16.msra.mxu0 0
    %805 = vmatprep.subr.bf16.mxu0 0
    %806 = vmatpush1.bf16.msra.mxu0 0
    %807 = vmatprep.subr.bf16.mxu0 0
    %808 = vmatpush1.bf16.msra.mxu0 0
    %809 = vmatprep.subr.bf16.mxu0 0
    %810 = vmatpush1.bf16.msra.mxu0 0
    %811 = vmatprep.subr.bf16.mxu0 0
    %812 = vmatpush1.bf16.msra.mxu0 0
    %813 = vmatprep.subr.bf16.mxu0 0
    %814 = vmatpush1.bf16.msra.mxu0 0
    %815 = vmatprep.subr.bf16.mxu0 0
    %816 = vmatpush1.bf16.msra.mxu0 0
    %817 = vmatprep.subr.bf16.mxu0 0
    %818 = vmatpush1.bf16.msra.mxu0 0
    %819 = vmatprep.subr.bf16.mxu0 0
    %820 = vmatpush1.bf16.msra.mxu0 0
    %821 = vmatprep.subr.bf16.mxu0 0
    %822 = vmatpush1.bf16.msra.mxu0 0
    %823 = vmatprep.subr.bf16.mxu0 0
    %824 = vmatpush1.bf16.msra.mxu0 0
    %825 = vmatprep.subr.bf16.mxu0 0
    %826 = vmatpush1.bf16.msra.mxu0 0
    %827 = vmatprep.subr.bf16.mxu0 0
    %828 = vmatpush1.bf16.msra.mxu0 0
    %829 = vmatprep.mubr.bf16.mxu0 0
    %830 = vmatmul.mubr.bf16.gmra.mrb[0].mxu0 %v740
    %v831 = vpop.f32.mrb[0].mxu0
    %v832 = vadd.f32 0.0, %v831
    %v833 = vpop.f32.mrb[0].mxu0
    %v834 = vadd.f32 0.0, %v833
    %v835 = vpop.f32.mrb[0].mxu0
    %v836 = vpop.f32.mrb[0].mxu0
    %837 = vdwg.mxu0
    %v838 = vmul.f32 %v791, 18.849556
    %v839 = vmul.f32 %v793, 18.849556
    %v840 = vmul.f32 %v832, 18.849556
    %v841 = vmul.f32 %v834, 18.849556
    %v842 = vmul.f32 %v791, 0.25
    %v843 = vmul.f32 %v793, 0.25
    %v844 = vmul.f32 %v832, 0.25
    %v845 = vmul.f32 %v834, 0.25
    %v846 = vand.u32 2147483647, %v838
    %vm847 = vcmp.le.f32.partialorder %v846, 0.7853982
    %vm848 = vcmp.lt.s32.totalorder %v838, 0
    %v849 = vand.u32 %v838, 2139095040
    %v850 = vshrl.u32 %v849, 23
    %v851 = vsub.s32 %v850, 127
    %v852 = vand.u32 2147483647, %v838
    %v853 = vand.u32 %v852, 8388607
    %v854 = vor.u32 %v853, 8388608
    %v855 = vsub.s32 0, %v854
    %v856 = vadd.s32 %v851, 1
    %vm857 = vcmp.gt.s32.totalorder %v856, 0
    %v858 = vsel %vm857, %v856, 0
    %v859 = vshrl.u32 %v858, 5
    %v860 = vand.u32 %v858, 31
    %v861 = vsub.s32 32, %v860
    %v862 = vshrl.u32 683565275, %v861
    %v863 = vshll.u32 683565275, %v860
    %v864 = vshrl.u32 2475754826, %v861
    %v865 = vor.u32 %v863, %v864
    %v866 = vshll.u32 2475754826, %v860
    %v867 = vshrl.u32 2131351028, %v861
    %v868 = vor.u32 %v866, %v867
    %v869 = vshll.u32 2131351028, %v860
    %v870 = vshrl.u32 2102212464, %v861
    %v871 = vor.u32 %v869, %v870
    %v872 = vshll.u32 2102212464, %v860
    %v873 = vshrl.u32 920167782, %v861
    %v874 = vor.u32 %v872, %v873
    %v875 = vshll.u32 920167782, %v860
    %v876 = vshrl.u32 1326507024, %v861
    %v877 = vor.u32 %v875, %v876
    %vm878 = vcmp.lt.s32.totalorder %v859, 1
    %vm879 = vcmp.lt.s32.totalorder %v859, 2
    %vm880 = vcmp.lt.s32.totalorder %v859, 3
    %vm881 = vcmp.lt.s32.totalorder %v859, 4
    %v882 = vsel %vm878, %v862, %v865
    %v883 = vsel %vm881, %v871, 2102212464
    %v884 = vsel %vm880, %v868, %v883
    %v885 = vsel %vm879, %v882, %v884
    %v886 = vsel %vm878, %v865, %v868
    %v887 = vsel %vm881, %v874, 920167782
    %v888 = vsel %vm880, %v871, %v887
    %v889 = vsel %vm879, %v886, %v888
    %v890 = vsel %vm878, %v868, %v871
    %v891 = vsel %vm881, %v877, 1326507024
    %v892 = vsel %vm880, %v874, %v891
    %v893 = vsel %vm879, %v890, %v892
    %v894 = vshll.u32 %v854, 8
    %v895 = vmul.u32.u64.compose %v894, %v893
    %v896 = vextract.low.u32 %v895
    %v897 = vextract.high.u32 %v895
    %v898 = vmul.u32.u64.compose %v894, %v889
    %v899 = vextract.low.u32 %v898
    %v900 = vextract.high.u32 %v898
    %v901 = vmul.u32 %v894, %v885
    %v902 = vadd.s32 %v897, %v899
    %vm903 = vc.u32 %v897, %v899
    %v904 = vadd.s32 %v900, 1
    %v905 = vsel %vm903, %v904, %v900
    %v906 = vadd.s32 %v901, %v905
    %v907 = vadd.s32 %v906, 536870912
    %v908 = vshrl.u32 %v907, 30
    %v909 = vshll.u32 %v908, 30
    %v910 = vsub.s32 %v906, %v909
    %vm911 = vcmp.lt.s32.totalorder %v910, 0
    %v912 = vsub.s32 0, %v910
    %v913 = vsel %vm911, %v912, %v910
    %v914 = vclz %v913
    %v915 = vsub.s32 %v914, 2
    %vm916 = vcmp.gt.s32.totalorder 0, %v915
    %v917 = vsel %vm916, 0, %v915
    %v918 = vsub.s32 32, %v917
    %v919 = vshll.u32 %v910, %v917
    %v920 = vshrl.u32 %v902, %v918
    %v921 = vor.u32 %v919, %v920
    %v922 = vsub.s32 4294967266, %v917
    %v923 = vadd.s32 %v922, 127
    %v924 = vshll.u32 %v923, 23
    %v925 = vor.u32 4788187, %v924
    %v926 = vand.u32 2147483647, %v925
    %v928 = vcvt.s32.f32 %v921
    %v929 = vmul.f32 %v928, %v926
    %v930 = vxor.u32 %v929, 2147483648
    %v931 = vsel %vm848, %v930, %v929
    %v932 = vsub.s32 4, %v908
    %v933 = vsel %vm848, %v932, %v908
    %v934 = vsel %vm847, %v838, %v931
    %v935 = vsel %vm847, 0, %v933
    %v936 = vcosq.f32.pop %v934
    %v937 = vsinq.f32.pop %v934
    %vm938 = vweird.f32 %v838
    %v939 = vand.u32 %v935, 3
    %vm940 = vcmp.lt.s32.totalorder %v939, 2
    %vm941 = vcmp.eq.s32.totalorder %v939, 0
    %v942 = vxor.u32 %v937, 2147483648
    %v943 = vsel %vm941, %v936, %v942
    %vm944 = vcmp.eq.s32.totalorder %v939, 2
    %v945 = vxor.u32 %v936, 2147483648
    %v946 = vsel %vm944, %v945, %v937
    %v947 = vsel %vm940, %v943, %v946
    %v948 = vsel %vm938, nan, %v947
    %v949 = vand.u32 2147483647, %v839
    %vm950 = vcmp.le.f32.partialorder %v949, 0.7853982
    %vm951 = vcmp.lt.s32.totalorder %v839, 0
    %v952 = vand.u32 %v839, 2139095040
    %v953 = vshrl.u32 %v952, 23
    %v954 = vsub.s32 %v953, 127
    %v955 = vand.u32 2147483647, %v839
    %v956 = vand.u32 %v955, 8388607
    %v957 = vor.u32 %v956, 8388608
    %v958 = vsub.s32 0, %v957
    %v959 = vadd.s32 %v954, 1
    %vm960 = vcmp.gt.s32.totalorder %v959, 0
    %v961 = vsel %vm960, %v959, 0
    %v962 = vshrl.u32 %v961, 5
    %v963 = vand.u32 %v961, 31
    %v964 = vsub.s32 32, %v963
    %v965 = vshrl.u32 683565275, %v964
    %v966 = vshll.u32 683565275, %v963
    %v967 = vshrl.u32 2475754826, %v964
    %v968 = vor.u32 %v966, %v967
    %v969 = vshll.u32 2475754826, %v963
    %v970 = vshrl.u32 2131351028, %v964
    %v971 = vor.u32 %v969, %v970
    %v972 = vshll.u32 2131351028, %v963
    %v973 = vshrl.u32 2102212464, %v964
    %v974 = vor.u32 %v972, %v973
    %v975 = vshll.u32 2102212464, %v963
    %v976 = vshrl.u32 920167782, %v964
    %v977 = vor.u32 %v975, %v976
    %v978 = vshll.u32 920167782, %v963
    %v979 = vshrl.u32 1326507024, %v964
    %v980 = vor.u32 %v978, %v979
    %vm981 = vcmp.lt.s32.totalorder %v962, 1
    %vm982 = vcmp.lt.s32.totalorder %v962, 2
    %vm983 = vcmp.lt.s32.totalorder %v962, 3
    %vm984 = vcmp.lt.s32.totalorder %v962, 4
    %v985 = vsel %vm981, %v965, %v968
    %v986 = vsel %vm984, %v974, 2102212464
    %v987 = vsel %vm983, %v971, %v986
    %v988 = vsel %vm982, %v985, %v987
    %v989 = vsel %vm981, %v968, %v971
    %v990 = vsel %vm984, %v977, 920167782
    %v991 = vsel %vm983, %v974, %v990
    %v992 = vsel %vm982, %v989, %v991
    %v993 = vsel %vm981, %v971, %v974
    %v994 = vsel %vm984, %v980, 1326507024
    %v995 = vsel %vm983, %v977, %v994
    %v996 = vsel %vm982, %v993, %v995
    %v997 = vshll.u32 %v957, 8
    %v998 = vmul.u32.u64.compose %v997, %v996
    %v999 = vextract.low.u32 %v998
    %v1000 = vextract.high.u32 %v998
    %v1001 = vmul.u32.u64.compose %v997, %v992
    %v1002 = vextract.low.u32 %v1001
    %v1003 = vextract.high.u32 %v1001
    %v1004 = vmul.u32 %v997, %v988
    %v1005 = vadd.s32 %v1000, %v1002
    %vm1006 = vc.u32 %v1000, %v1002
    %v1007 = vadd.s32 %v1003, 1
    %v1008 = vsel %vm1006, %v1007, %v1003
    %v1009 = vadd.s32 %v1004, %v1008
    %v1010 = vadd.s32 %v1009, 536870912
    %v1011 = vshrl.u32 %v1010, 30
    %v1012 = vshll.u32 %v1011, 30
    %v1013 = vsub.s32 %v1009, %v1012
    %vm1014 = vcmp.lt.s32.totalorder %v1013, 0
    %v1015 = vsub.s32 0, %v1013
    %v1016 = vsel %vm1014, %v1015, %v1013
    %v1017 = vclz %v1016
    %v1018 = vsub.s32 %v1017, 2
    %vm1019 = vcmp.gt.s32.totalorder 0, %v1018
    %v1020 = vsel %vm1019, 0, %v1018
    %v1021 = vsub.s32 32, %v1020
    %v1022 = vshll.u32 %v1013, %v1020
    %v1023 = vshrl.u32 %v1005, %v1021
    %v1024 = vor.u32 %v1022, %v1023
    %v1025 = vsub.s32 4294967266, %v1020
    %v1026 = vadd.s32 %v1025, 127
    %v1027 = vshll.u32 %v1026, 23
    %v1028 = vor.u32 4788187, %v1027
    %v1029 = vand.u32 2147483647, %v1028
    %v1031 = vcvt.s32.f32 %v1024
    %v1032 = vmul.f32 %v1031, %v1029
    %v1033 = vxor.u32 %v1032, 2147483648
    %v1034 = vsel %vm951, %v1033, %v1032
    %v1035 = vsub.s32 4, %v1011
    %v1036 = vsel %vm951, %v1035, %v1011
    %v1037 = vsel %vm950, %v839, %v1034
    %v1038 = vsel %vm950, 0, %v1036
    %v1039 = vcosq.f32.pop %v1037
    %v1040 = vsinq.f32.pop %v1037
    %vm1041 = vweird.f32 %v839
    %v1042 = vand.u32 %v1038, 3
    %vm1043 = vcmp.lt.s32.totalorder %v1042, 2
    %vm1044 = vcmp.eq.s32.totalorder %v1042, 0
    %v1045 = vxor.u32 %v1040, 2147483648
    %v1046 = vsel %vm1044, %v1039, %v1045
    %vm1047 = vcmp.eq.s32.totalorder %v1042, 2
    %v1048 = vxor.u32 %v1039, 2147483648
    %v1049 = vsel %vm1047, %v1048, %v1040
    %v1050 = vsel %vm1043, %v1046, %v1049
    %v1051 = vsel %vm1041, nan, %v1050
    %v1052 = vand.u32 2147483647, %v840
    %vm1053 = vcmp.le.f32.partialorder %v1052, 0.7853982
    %vm1054 = vcmp.lt.s32.totalorder %v840, 0
    %v1055 = vand.u32 %v840, 2139095040
    %v1056 = vshrl.u32 %v1055, 23
    %v1057 = vsub.s32 %v1056, 127
    %v1058 = vand.u32 2147483647, %v840
    %v1059 = vand.u32 %v1058, 8388607
    %v1060 = vor.u32 %v1059, 8388608
    %v1061 = vsub.s32 0, %v1060
    %v1062 = vadd.s32 %v1057, 1
    %vm1063 = vcmp.gt.s32.totalorder %v1062, 0
    %v1064 = vsel %vm1063, %v1062, 0
    %v1065 = vshrl.u32 %v1064, 5
    %v1066 = vand.u32 %v1064, 31
    %v1067 = vsub.s32 32, %v1066
    %v1068 = vshrl.u32 683565275, %v1067
    %v1069 = vshll.u32 683565275, %v1066
    %v1070 = vshrl.u32 2475754826, %v1067
    %v1071 = vor.u32 %v1069, %v1070
    %v1072 = vshll.u32 2475754826, %v1066
    %v1073 = vshrl.u32 2131351028, %v1067
    %v1074 = vor.u32 %v1072, %v1073
    %v1075 = vshll.u32 2131351028, %v1066
    %v1076 = vshrl.u32 2102212464, %v1067
    %v1077 = vor.u32 %v1075, %v1076
    %v1078 = vshll.u32 2102212464, %v1066
    %v1079 = vshrl.u32 920167782, %v1067
    %v1080 = vor.u32 %v1078, %v1079
    %v1081 = vshll.u32 920167782, %v1066
    %v1082 = vshrl.u32 1326507024, %v1067
    %v1083 = vor.u32 %v1081, %v1082
    %vm1084 = vcmp.lt.s32.totalorder %v1065, 1
    %vm1085 = vcmp.lt.s32.totalorder %v1065, 2
    %vm1086 = vcmp.lt.s32.totalorder %v1065, 3
    %vm1087 = vcmp.lt.s32.totalorder %v1065, 4
    %v1088 = vsel %vm1084, %v1068, %v1071
    %v1089 = vsel %vm1087, %v1077, 2102212464
    %v1090 = vsel %vm1086, %v1074, %v1089
    %v1091 = vsel %vm1085, %v1088, %v1090
    %v1092 = vsel %vm1084, %v1071, %v1074
    %v1093 = vsel %vm1087, %v1080, 920167782
    %v1094 = vsel %vm1086, %v1077, %v1093
    %v1095 = vsel %vm1085, %v1092, %v1094
    %v1096 = vsel %vm1084, %v1074, %v1077
    %v1097 = vsel %vm1087, %v1083, 1326507024
    %v1098 = vsel %vm1086, %v1080, %v1097
    %v1099 = vsel %vm1085, %v1096, %v1098
    %v1100 = vshll.u32 %v1060, 8
    %v1101 = vmul.u32.u64.compose %v1100, %v1099
    %v1102 = vextract.low.u32 %v1101
    %v1103 = vextract.high.u32 %v1101
    %v1104 = vmul.u32.u64.compose %v1100, %v1095
    %v1105 = vextract.low.u32 %v1104
    %v1106 = vextract.high.u32 %v1104
    %v1107 = vmul.u32 %v1100, %v1091
    %v1108 = vadd.s32 %v1103, %v1105
    %vm1109 = vc.u32 %v1103, %v1105
    %v1110 = vadd.s32 %v1106, 1
    %v1111 = vsel %vm1109, %v1110, %v1106
    %v1112 = vadd.s32 %v1107, %v1111
    %v1113 = vadd.s32 %v1112, 536870912
    %v1114 = vshrl.u32 %v1113, 30
    %v1115 = vshll.u32 %v1114, 30
    %v1116 = vsub.s32 %v1112, %v1115
    %vm1117 = vcmp.lt.s32.totalorder %v1116, 0
    %v1118 = vsub.s32 0, %v1116
    %v1119 = vsel %vm1117, %v1118, %v1116
    %v1120 = vclz %v1119
    %v1121 = vsub.s32 %v1120, 2
    %vm1122 = vcmp.gt.s32.totalorder 0, %v1121
    %v1123 = vsel %vm1122, 0, %v1121
    %v1124 = vsub.s32 32, %v1123
    %v1125 = vshll.u32 %v1116, %v1123
    %v1126 = vshrl.u32 %v1108, %v1124
    %v1127 = vor.u32 %v1125, %v1126
    %v1128 = vsub.s32 4294967266, %v1123
    %v1129 = vadd.s32 %v1128, 127
    %v1130 = vshll.u32 %v1129, 23
    %v1131 = vor.u32 4788187, %v1130
    %v1132 = vand.u32 2147483647, %v1131
    %v1134 = vcvt.s32.f32 %v1127
    %v1135 = vmul.f32 %v1134, %v1132
    %v1136 = vxor.u32 %v1135, 2147483648
    %v1137 = vsel %vm1054, %v1136, %v1135
    %v1138 = vsub.s32 4, %v1114
    %v1139 = vsel %vm1054, %v1138, %v1114
    %v1140 = vsel %vm1053, %v840, %v1137
    %v1141 = vsel %vm1053, 0, %v1139
    %v1142 = vcosq.f32.pop %v1140
    %v1143 = vsinq.f32.pop %v1140
    %vm1144 = vweird.f32 %v840
    %v1145 = vand.u32 %v1141, 3
    %vm1146 = vcmp.lt.s32.totalorder %v1145, 2
    %vm1147 = vcmp.eq.s32.totalorder %v1145, 0
    %v1148 = vxor.u32 %v1143, 2147483648
    %v1149 = vsel %vm1147, %v1142, %v1148
    %vm1150 = vcmp.eq.s32.totalorder %v1145, 2
    %v1151 = vxor.u32 %v1142, 2147483648
    %v1152 = vsel %vm1150, %v1151, %v1143
    %v1153 = vsel %vm1146, %v1149, %v1152
    %v1154 = vsel %vm1144, nan, %v1153
    %v1155 = vand.u32 2147483647, %v841
    %vm1156 = vcmp.le.f32.partialorder %v1155, 0.7853982
    %vm1157 = vcmp.lt.s32.totalorder %v841, 0
    %v1158 = vand.u32 %v841, 2139095040
    %v1159 = vshrl.u32 %v1158, 23
    %v1160 = vsub.s32 %v1159, 127
    %v1161 = vand.u32 2147483647, %v841
    %v1162 = vand.u32 %v1161, 8388607
    %v1163 = vor.u32 %v1162, 8388608
    %v1164 = vsub.s32 0, %v1163
    %v1165 = vadd.s32 %v1160, 1
    %vm1166 = vcmp.gt.s32.totalorder %v1165, 0
    %v1167 = vsel %vm1166, %v1165, 0
    %v1168 = vshrl.u32 %v1167, 5
    %v1169 = vand.u32 %v1167, 31
    %v1170 = vsub.s32 32, %v1169
    %v1171 = vshrl.u32 683565275, %v1170
    %v1172 = vshll.u32 683565275, %v1169
    %v1173 = vshrl.u32 2475754826, %v1170
    %v1174 = vor.u32 %v1172, %v1173
    %v1175 = vshll.u32 2475754826, %v1169
    %v1176 = vshrl.u32 2131351028, %v1170
    %v1177 = vor.u32 %v1175, %v1176
    %v1178 = vshll.u32 2131351028, %v1169
    %v1179 = vshrl.u32 2102212464, %v1170
    %v1180 = vor.u32 %v1178, %v1179
    %v1181 = vshll.u32 2102212464, %v1169
    %v1182 = vshrl.u32 920167782, %v1170
    %v1183 = vor.u32 %v1181, %v1182
    %v1184 = vshll.u32 920167782, %v1169
    %v1185 = vshrl.u32 1326507024, %v1170
    %v1186 = vor.u32 %v1184, %v1185
    %vm1187 = vcmp.lt.s32.totalorder %v1168, 1
    %vm1188 = vcmp.lt.s32.totalorder %v1168, 2
    %vm1189 = vcmp.lt.s32.totalorder %v1168, 3
    %vm1190 = vcmp.lt.s32.totalorder %v1168, 4
    %v1191 = vsel %vm1187, %v1171, %v1174
    %v1192 = vsel %vm1190, %v1180, 2102212464
    %v1193 = vsel %vm1189, %v1177, %v1192
    %v1194 = vsel %vm1188, %v1191, %v1193
    %v1195 = vsel %vm1187, %v1174, %v1177
    %v1196 = vsel %vm1190, %v1183, 920167782
    %v1197 = vsel %vm1189, %v1180, %v1196
    %v1198 = vsel %vm1188, %v1195, %v1197
    %v1199 = vsel %vm1187, %v1177, %v1180
    %v1200 = vsel %vm1190, %v1186, 1326507024
    %v1201 = vsel %vm1189, %v1183, %v1200
    %v1202 = vsel %vm1188, %v1199, %v1201
    %v1203 = vshll.u32 %v1163, 8
    %v1204 = vmul.u32.u64.compose %v1203, %v1202
    %v1205 = vextract.low.u32 %v1204
    %v1206 = vextract.high.u32 %v1204
    %v1207 = vmul.u32.u64.compose %v1203, %v1198
    %v1208 = vextract.low.u32 %v1207
    %v1209 = vextract.high.u32 %v1207
    %v1210 = vmul.u32 %v1203, %v1194
    %v1211 = vadd.s32 %v1206, %v1208
    %vm1212 = vc.u32 %v1206, %v1208
    %v1213 = vadd.s32 %v1209, 1
    %v1214 = vsel %vm1212, %v1213, %v1209
    %v1215 = vadd.s32 %v1210, %v1214
    %v1216 = vadd.s32 %v1215, 536870912
    %v1217 = vshrl.u32 %v1216, 30
    %v1218 = vshll.u32 %v1217, 30
    %v1219 = vsub.s32 %v1215, %v1218
    %vm1220 = vcmp.lt.s32.totalorder %v1219, 0
    %v1221 = vsub.s32 0, %v1219
    %v1222 = vsel %vm1220, %v1221, %v1219
    %v1223 = vclz %v1222
    %v1224 = vsub.s32 %v1223, 2
    %vm1225 = vcmp.gt.s32.totalorder 0, %v1224
    %v1226 = vsel %vm1225, 0, %v1224
    %v1227 = vsub.s32 32, %v1226
    %v1228 = vshll.u32 %v1219, %v1226
    %v1229 = vshrl.u32 %v1211, %v1227
    %v1230 = vor.u32 %v1228, %v1229
    %v1231 = vsub.s32 4294967266, %v1226
    %v1232 = vadd.s32 %v1231, 127
    %v1233 = vshll.u32 %v1232, 23
    %v1234 = vor.u32 4788187, %v1233
    %v1235 = vand.u32 2147483647, %v1234
    %v1237 = vcvt.s32.f32 %v1230
    %v1238 = vmul.f32 %v1237, %v1235
    %v1239 = vxor.u32 %v1238, 2147483648
    %v1240 = vsel %vm1157, %v1239, %v1238
    %v1241 = vsub.s32 4, %v1217
    %v1242 = vsel %vm1157, %v1241, %v1217
    %v1243 = vsel %vm1156, %v841, %v1240
    %v1244 = vsel %vm1156, 0, %v1242
    %v1245 = vcosq.f32.pop %v1243
    %v1246 = vsinq.f32.pop %v1243
    %vm1247 = vweird.f32 %v841
    %v1248 = vand.u32 %v1244, 3
    %vm1249 = vcmp.lt.s32.totalorder %v1248, 2
    %vm1250 = vcmp.eq.s32.totalorder %v1248, 0
    %v1251 = vxor.u32 %v1246, 2147483648
    %v1252 = vsel %vm1250, %v1245, %v1251
    %vm1253 = vcmp.eq.s32.totalorder %v1248, 2
    %v1254 = vxor.u32 %v1245, 2147483648
    %v1255 = vsel %vm1253, %v1254, %v1246
    %v1256 = vsel %vm1249, %v1252, %v1255
    %v1257 = vsel %vm1247, nan, %v1256
    %v1262 = vrot.slane %v948, 4
    %v1263 = vrot.slane %v1051, 4
    %v1264 = vrot.slane %v1154, 4
    %v1265 = vrot.slane %v1257, 4
    %v1270 = vmul.f32 %v842, %v1262
    %v1271 = vmul.f32 %v843, %v1263
    %v1272 = vmul.f32 %v844, %v1264
    %v1273 = vmul.f32 %v845, %v1265
    %v1274 = vand.u32 2147483647, %v838
    %vm1275 = vcmp.le.f32.partialorder %v1274, 0.7853982
    %vm1276 = vcmp.lt.s32.totalorder %v838, 0
    %v1277 = vand.u32 %v838, 2139095040
    %v1278 = vshrl.u32 %v1277, 23
    %v1279 = vsub.s32 %v1278, 127
    %v1280 = vand.u32 2147483647, %v838
    %v1281 = vand.u32 %v1280, 8388607
    %v1282 = vor.u32 %v1281, 8388608
    %v1283 = vsub.s32 0, %v1282
    %v1284 = vadd.s32 %v1279, 1
    %vm1285 = vcmp.gt.s32.totalorder %v1284, 0
    %v1286 = vsel %vm1285, %v1284, 0
    %v1287 = vshrl.u32 %v1286, 5
    %v1288 = vand.u32 %v1286, 31
    %v1289 = vsub.s32 32, %v1288
    %v1290 = vshrl.u32 683565275, %v1289
    %v1291 = vshll.u32 683565275, %v1288
    %v1292 = vshrl.u32 2475754826, %v1289
    %v1293 = vor.u32 %v1291, %v1292
    %v1294 = vshll.u32 2475754826, %v1288
    %v1295 = vshrl.u32 2131351028, %v1289
    %v1296 = vor.u32 %v1294, %v1295
    %v1297 = vshll.u32 2131351028, %v1288
    %v1298 = vshrl.u32 2102212464, %v1289
    %v1299 = vor.u32 %v1297, %v1298
    %v1300 = vshll.u32 2102212464, %v1288
    %v1301 = vshrl.u32 920167782, %v1289
    %v1302 = vor.u32 %v1300, %v1301
    %v1303 = vshll.u32 920167782, %v1288
    %v1304 = vshrl.u32 1326507024, %v1289
    %v1305 = vor.u32 %v1303, %v1304
    %vm1306 = vcmp.lt.s32.totalorder %v1287, 1
    %vm1307 = vcmp.lt.s32.totalorder %v1287, 2
    %vm1308 = vcmp.lt.s32.totalorder %v1287, 3
    %vm1309 = vcmp.lt.s32.totalorder %v1287, 4
    %v1310 = vsel %vm1306, %v1290, %v1293
    %v1311 = vsel %vm1309, %v1299, 2102212464
    %v1312 = vsel %vm1308, %v1296, %v1311
    %v1313 = vsel %vm1307, %v1310, %v1312
    %v1314 = vsel %vm1306, %v1293, %v1296
    %v1315 = vsel %vm1309, %v1302, 920167782
    %v1316 = vsel %vm1308, %v1299, %v1315
    %v1317 = vsel %vm1307, %v1314, %v1316
    %v1318 = vsel %vm1306, %v1296, %v1299
    %v1319 = vsel %vm1309, %v1305, 1326507024
    %v1320 = vsel %vm1308, %v1302, %v1319
    %v1321 = vsel %vm1307, %v1318, %v1320
    %v1322 = vshll.u32 %v1282, 8
    %v1323 = vmul.u32.u64.compose %v1322, %v1321
    %v1324 = vextract.low.u32 %v1323
    %v1325 = vextract.high.u32 %v1323
    %v1326 = vmul.u32.u64.compose %v1322, %v1317
    %v1327 = vextract.low.u32 %v1326
    %v1328 = vextract.high.u32 %v1326
    %v1329 = vmul.u32 %v1322, %v1313
    %v1330 = vadd.s32 %v1325, %v1327
    %vm1331 = vc.u32 %v1325, %v1327
    %v1332 = vadd.s32 %v1328, 1
    %v1333 = vsel %vm1331, %v1332, %v1328
    %v1334 = vadd.s32 %v1329, %v1333
    %v1335 = vadd.s32 %v1334, 536870912
    %v1336 = vshrl.u32 %v1335, 30
    %v1337 = vshll.u32 %v1336, 30
    %v1338 = vsub.s32 %v1334, %v1337
    %vm1339 = vcmp.lt.s32.totalorder %v1338, 0
    %v1340 = vsub.s32 0, %v1338
    %v1341 = vsel %vm1339, %v1340, %v1338
    %v1342 = vclz %v1341
    %v1343 = vsub.s32 %v1342, 2
    %vm1344 = vcmp.gt.s32.totalorder 0, %v1343
    %v1345 = vsel %vm1344, 0, %v1343
    %v1346 = vsub.s32 32, %v1345
    %v1347 = vshll.u32 %v1338, %v1345
    %v1348 = vshrl.u32 %v1330, %v1346
    %v1349 = vor.u32 %v1347, %v1348
    %v1350 = vsub.s32 4294967266, %v1345
    %v1351 = vadd.s32 %v1350, 127
    %v1352 = vshll.u32 %v1351, 23
    %v1353 = vor.u32 4788187, %v1352
    %v1354 = vand.u32 2147483647, %v1353
    %v1356 = vcvt.s32.f32 %v1349
    %v1357 = vmul.f32 %v1356, %v1354
    %v1358 = vxor.u32 %v1357, 2147483648
    %v1359 = vsel %vm1276, %v1358, %v1357
    %v1360 = vsub.s32 4, %v1336
    %v1361 = vsel %vm1276, %v1360, %v1336
    %v1362 = vsel %vm1275, %v838, %v1359
    %v1363 = vsel %vm1275, 0, %v1361
    %v1364 = vcosq.f32.pop %v1362
    %v1365 = vsinq.f32.pop %v1362
    %vm1366 = vweird.f32 %v838
    %v1367 = vadd.s32 %v1363, 3
    %v1368 = vand.u32 %v1367, 3
    %vm1369 = vcmp.lt.s32.totalorder %v1368, 2
    %vm1370 = vcmp.eq.s32.totalorder %v1368, 0
    %v1371 = vxor.u32 %v1365, 2147483648
    %v1372 = vsel %vm1370, %v1364, %v1371
    %vm1373 = vcmp.eq.s32.totalorder %v1368, 2
    %v1374 = vxor.u32 %v1364, 2147483648
    %v1375 = vsel %vm1373, %v1374, %v1365
    %v1376 = vsel %vm1369, %v1372, %v1375
    %v1377 = vsel %vm1366, nan, %v1376
    %v1378 = vand.u32 2147483647, %v839
    %vm1379 = vcmp.le.f32.partialorder %v1378, 0.7853982
    %vm1380 = vcmp.lt.s32.totalorder %v839, 0
    %v1381 = vand.u32 %v839, 2139095040
    %v1382 = vshrl.u32 %v1381, 23
    %v1383 = vsub.s32 %v1382, 127
    %v1384 = vand.u32 2147483647, %v839
    %v1385 = vand.u32 %v1384, 8388607
    %v1386 = vor.u32 %v1385, 8388608
    %v1387 = vsub.s32 0, %v1386
    %v1388 = vadd.s32 %v1383, 1
    %vm1389 = vcmp.gt.s32.totalorder %v1388, 0
    %v1390 = vsel %vm1389, %v1388, 0
    %v1391 = vshrl.u32 %v1390, 5
    %v1392 = vand.u32 %v1390, 31
    %v1393 = vsub.s32 32, %v1392
    %v1394 = vshrl.u32 683565275, %v1393
    %v1395 = vshll.u32 683565275, %v1392
    %v1396 = vshrl.u32 2475754826, %v1393
    %v1397 = vor.u32 %v1395, %v1396
    %v1398 = vshll.u32 2475754826, %v1392
    %v1399 = vshrl.u32 2131351028, %v1393
    %v1400 = vor.u32 %v1398, %v1399
    %v1401 = vshll.u32 2131351028, %v1392
    %v1402 = vshrl.u32 2102212464, %v1393
    %v1403 = vor.u32 %v1401, %v1402
    %v1404 = vshll.u32 2102212464, %v1392
    %v1405 = vshrl.u32 920167782, %v1393
    %v1406 = vor.u32 %v1404, %v1405
    %v1407 = vshll.u32 920167782, %v1392
    %v1408 = vshrl.u32 1326507024, %v1393
    %v1409 = vor.u32 %v1407, %v1408
    %vm1410 = vcmp.lt.s32.totalorder %v1391, 1
    %vm1411 = vcmp.lt.s32.totalorder %v1391, 2
    %vm1412 = vcmp.lt.s32.totalorder %v1391, 3
    %vm1413 = vcmp.lt.s32.totalorder %v1391, 4
    %v1414 = vsel %vm1410, %v1394, %v1397
    %v1415 = vsel %vm1413, %v1403, 2102212464
    %v1416 = vsel %vm1412, %v1400, %v1415
    %v1417 = vsel %vm1411, %v1414, %v1416
    %v1418 = vsel %vm1410, %v1397, %v1400
    %v1419 = vsel %vm1413, %v1406, 920167782
    %v1420 = vsel %vm1412, %v1403, %v1419
    %v1421 = vsel %vm1411, %v1418, %v1420
    %v1422 = vsel %vm1410, %v1400, %v1403
    %v1423 = vsel %vm1413, %v1409, 1326507024
    %v1424 = vsel %vm1412, %v1406, %v1423
    %v1425 = vsel %vm1411, %v1422, %v1424
    %v1426 = vshll.u32 %v1386, 8
    %v1427 = vmul.u32.u64.compose %v1426, %v1425
    %v1428 = vextract.low.u32 %v1427
    %v1429 = vextract.high.u32 %v1427
    %v1430 = vmul.u32.u64.compose %v1426, %v1421
    %v1431 = vextract.low.u32 %v1430
    %v1432 = vextract.high.u32 %v1430
    %v1433 = vmul.u32 %v1426, %v1417
    %v1434 = vadd.s32 %v1429, %v1431
    %vm1435 = vc.u32 %v1429, %v1431
    %v1436 = vadd.s32 %v1432, 1
    %v1437 = vsel %vm1435, %v1436, %v1432
    %v1438 = vadd.s32 %v1433, %v1437
    %v1439 = vadd.s32 %v1438, 536870912
    %v1440 = vshrl.u32 %v1439, 30
    %v1441 = vshll.u32 %v1440, 30
    %v1442 = vsub.s32 %v1438, %v1441
    %vm1443 = vcmp.lt.s32.totalorder %v1442, 0
    %v1444 = vsub.s32 0, %v1442
    %v1445 = vsel %vm1443, %v1444, %v1442
    %v1446 = vclz %v1445
    %v1447 = vsub.s32 %v1446, 2
    %vm1448 = vcmp.gt.s32.totalorder 0, %v1447
    %v1449 = vsel %vm1448, 0, %v1447
    %v1450 = vsub.s32 32, %v1449
    %v1451 = vshll.u32 %v1442, %v1449
    %v1452 = vshrl.u32 %v1434, %v1450
    %v1453 = vor.u32 %v1451, %v1452
    %v1454 = vsub.s32 4294967266, %v1449
    %v1455 = vadd.s32 %v1454, 127
    %v1456 = vshll.u32 %v1455, 23
    %v1457 = vor.u32 4788187, %v1456
    %v1458 = vand.u32 2147483647, %v1457
    %v1460 = vcvt.s32.f32 %v1453
    %v1461 = vmul.f32 %v1460, %v1458
    %v1462 = vxor.u32 %v1461, 2147483648
    %v1463 = vsel %vm1380, %v1462, %v1461
    %v1464 = vsub.s32 4, %v1440
    %v1465 = vsel %vm1380, %v1464, %v1440
    %v1466 = vsel %vm1379, %v839, %v1463
    %v1467 = vsel %vm1379, 0, %v1465
    %v1468 = vcosq.f32.pop %v1466
    %v1469 = vsinq.f32.pop %v1466
    %vm1470 = vweird.f32 %v839
    %v1471 = vadd.s32 %v1467, 3
    %v1472 = vand.u32 %v1471, 3
    %vm1473 = vcmp.lt.s32.totalorder %v1472, 2
    %vm1474 = vcmp.eq.s32.totalorder %v1472, 0
    %v1475 = vxor.u32 %v1469, 2147483648
    %v1476 = vsel %vm1474, %v1468, %v1475
    %vm1477 = vcmp.eq.s32.totalorder %v1472, 2
    %v1478 = vxor.u32 %v1468, 2147483648
    %v1479 = vsel %vm1477, %v1478, %v1469
    %v1480 = vsel %vm1473, %v1476, %v1479
    %v1481 = vsel %vm1470, nan, %v1480
    %v1482 = vand.u32 2147483647, %v840
    %vm1483 = vcmp.le.f32.partialorder %v1482, 0.7853982
    %vm1484 = vcmp.lt.s32.totalorder %v840, 0
    %v1485 = vand.u32 %v840, 2139095040
    %v1486 = vshrl.u32 %v1485, 23
    %v1487 = vsub.s32 %v1486, 127
    %v1488 = vand.u32 2147483647, %v840
    %v1489 = vand.u32 %v1488, 8388607
    %v1490 = vor.u32 %v1489, 8388608
    %v1491 = vsub.s32 0, %v1490
    %v1492 = vadd.s32 %v1487, 1
    %vm1493 = vcmp.gt.s32.totalorder %v1492, 0
    %v1494 = vsel %vm1493, %v1492, 0
    %v1495 = vshrl.u32 %v1494, 5
    %v1496 = vand.u32 %v1494, 31
    %v1497 = vsub.s32 32, %v1496
    %v1498 = vshrl.u32 683565275, %v1497
    %v1499 = vshll.u32 683565275, %v1496
    %v1500 = vshrl.u32 2475754826, %v1497
    %v1501 = vor.u32 %v1499, %v1500
    %v1502 = vshll.u32 2475754826, %v1496
    %v1503 = vshrl.u32 2131351028, %v1497
    %v1504 = vor.u32 %v1502, %v1503
    %v1505 = vshll.u32 2131351028, %v1496
    %v1506 = vshrl.u32 2102212464, %v1497
    %v1507 = vor.u32 %v1505, %v1506
    %v1508 = vshll.u32 2102212464, %v1496
    %v1509 = vshrl.u32 920167782, %v1497
    %v1510 = vor.u32 %v1508, %v1509
    %v1511 = vshll.u32 920167782, %v1496
    %v1512 = vshrl.u32 1326507024, %v1497
    %v1513 = vor.u32 %v1511, %v1512
    %vm1514 = vcmp.lt.s32.totalorder %v1495, 1
    %vm1515 = vcmp.lt.s32.totalorder %v1495, 2
    %vm1516 = vcmp.lt.s32.totalorder %v1495, 3
    %vm1517 = vcmp.lt.s32.totalorder %v1495, 4
    %v1518 = vsel %vm1514, %v1498, %v1501
    %v1519 = vsel %vm1517, %v1507, 2102212464
    %v1520 = vsel %vm1516, %v1504, %v1519
    %v1521 = vsel %vm1515, %v1518, %v1520
    %v1522 = vsel %vm1514, %v1501, %v1504
    %v1523 = vsel %vm1517, %v1510, 920167782
    %v1524 = vsel %vm1516, %v1507, %v1523
    %v1525 = vsel %vm1515, %v1522, %v1524
    %v1526 = vsel %vm1514, %v1504, %v1507
    %v1527 = vsel %vm1517, %v1513, 1326507024
    %v1528 = vsel %vm1516, %v1510, %v1527
    %v1529 = vsel %vm1515, %v1526, %v1528
    %v1530 = vshll.u32 %v1490, 8
    %v1531 = vmul.u32.u64.compose %v1530, %v1529
    %v1532 = vextract.low.u32 %v1531
    %v1533 = vextract.high.u32 %v1531
    %v1534 = vmul.u32.u64.compose %v1530, %v1525
    %v1535 = vextract.low.u32 %v1534
    %v1536 = vextract.high.u32 %v1534
    %v1537 = vmul.u32 %v1530, %v1521
    %v1538 = vadd.s32 %v1533, %v1535
    %vm1539 = vc.u32 %v1533, %v1535
    %v1540 = vadd.s32 %v1536, 1
    %v1541 = vsel %vm1539, %v1540, %v1536
    %v1542 = vadd.s32 %v1537, %v1541
    %v1543 = vadd.s32 %v1542, 536870912
    %v1544 = vshrl.u32 %v1543, 30
    %v1545 = vshll.u32 %v1544, 30
    %v1546 = vsub.s32 %v1542, %v1545
    %vm1547 = vcmp.lt.s32.totalorder %v1546, 0
    %v1548 = vsub.s32 0, %v1546
    %v1549 = vsel %vm1547, %v1548, %v1546
    %v1550 = vclz %v1549
    %v1551 = vsub.s32 %v1550, 2
    %vm1552 = vcmp.gt.s32.totalorder 0, %v1551
    %v1553 = vsel %vm1552, 0, %v1551
    %v1554 = vsub.s32 32, %v1553
    %v1555 = vshll.u32 %v1546, %v1553
    %v1556 = vshrl.u32 %v1538, %v1554
    %v1557 = vor.u32 %v1555, %v1556
    %v1558 = vsub.s32 4294967266, %v1553
    %v1559 = vadd.s32 %v1558, 127
    %v1560 = vshll.u32 %v1559, 23
    %v1561 = vor.u32 4788187, %v1560
    %v1562 = vand.u32 2147483647, %v1561
    %v1564 = vcvt.s32.f32 %v1557
    %v1565 = vmul.f32 %v1564, %v1562
    %v1566 = vxor.u32 %v1565, 2147483648
    %v1567 = vsel %vm1484, %v1566, %v1565
    %v1568 = vsub.s32 4, %v1544
    %v1569 = vsel %vm1484, %v1568, %v1544
    %v1570 = vsel %vm1483, %v840, %v1567
    %v1571 = vsel %vm1483, 0, %v1569
    %v1572 = vcosq.f32.pop %v1570
    %v1573 = vsinq.f32.pop %v1570
    %vm1574 = vweird.f32 %v840
    %v1575 = vadd.s32 %v1571, 3
    %v1576 = vand.u32 %v1575, 3
    %vm1577 = vcmp.lt.s32.totalorder %v1576, 2
    %vm1578 = vcmp.eq.s32.totalorder %v1576, 0
    %v1579 = vxor.u32 %v1573, 2147483648
    %v1580 = vsel %vm1578, %v1572, %v1579
    %vm1581 = vcmp.eq.s32.totalorder %v1576, 2
    %v1582 = vxor.u32 %v1572, 2147483648
    %v1583 = vsel %vm1581, %v1582, %v1573
    %v1584 = vsel %vm1577, %v1580, %v1583
    %v1585 = vsel %vm1574, nan, %v1584
    %v1586 = vand.u32 2147483647, %v841
    %vm1587 = vcmp.le.f32.partialorder %v1586, 0.7853982
    %vm1588 = vcmp.lt.s32.totalorder %v841, 0
    %v1589 = vand.u32 %v841, 2139095040
    %v1590 = vshrl.u32 %v1589, 23
    %v1591 = vsub.s32 %v1590, 127
    %v1592 = vand.u32 2147483647, %v841
    %v1593 = vand.u32 %v1592, 8388607
    %v1594 = vor.u32 %v1593, 8388608
    %v1595 = vsub.s32 0, %v1594
    %v1596 = vadd.s32 %v1591, 1
    %vm1597 = vcmp.gt.s32.totalorder %v1596, 0
    %v1598 = vsel %vm1597, %v1596, 0
    %v1599 = vshrl.u32 %v1598, 5
    %v1600 = vand.u32 %v1598, 31
    %v1601 = vsub.s32 32, %v1600
    %v1602 = vshrl.u32 683565275, %v1601
    %v1603 = vshll.u32 683565275, %v1600
    %v1604 = vshrl.u32 2475754826, %v1601
    %v1605 = vor.u32 %v1603, %v1604
    %v1606 = vshll.u32 2475754826, %v1600
    %v1607 = vshrl.u32 2131351028, %v1601
    %v1608 = vor.u32 %v1606, %v1607
    %v1609 = vshll.u32 2131351028, %v1600
    %v1610 = vshrl.u32 2102212464, %v1601
    %v1611 = vor.u32 %v1609, %v1610
    %v1612 = vshll.u32 2102212464, %v1600
    %v1613 = vshrl.u32 920167782, %v1601
    %v1614 = vor.u32 %v1612, %v1613
    %v1615 = vshll.u32 920167782, %v1600
    %v1616 = vshrl.u32 1326507024, %v1601
    %v1617 = vor.u32 %v1615, %v1616
    %vm1618 = vcmp.lt.s32.totalorder %v1599, 1
    %vm1619 = vcmp.lt.s32.totalorder %v1599, 2
    %vm1620 = vcmp.lt.s32.totalorder %v1599, 3
    %vm1621 = vcmp.lt.s32.totalorder %v1599, 4
    %v1622 = vsel %vm1618, %v1602, %v1605
    %v1623 = vsel %vm1621, %v1611, 2102212464
    %v1624 = vsel %vm1620, %v1608, %v1623
    %v1625 = vsel %vm1619, %v1622, %v1624
    %v1626 = vsel %vm1618, %v1605, %v1608
    %v1627 = vsel %vm1621, %v1614, 920167782
    %v1628 = vsel %vm1620, %v1611, %v1627
    %v1629 = vsel %vm1619, %v1626, %v1628
    %v1630 = vsel %vm1618, %v1608, %v1611
    %v1631 = vsel %vm1621, %v1617, 1326507024
    %v1632 = vsel %vm1620, %v1614, %v1631
    %v1633 = vsel %vm1619, %v1630, %v1632
    %v1634 = vshll.u32 %v1594, 8
    %v1635 = vmul.u32.u64.compose %v1634, %v1633
    %v1636 = vextract.low.u32 %v1635
    %v1637 = vextract.high.u32 %v1635
    %v1638 = vmul.u32.u64.compose %v1634, %v1629
    %v1639 = vextract.low.u32 %v1638
    %v1640 = vextract.high.u32 %v1638
    %v1641 = vmul.u32 %v1634, %v1625
    %v1642 = vadd.s32 %v1637, %v1639
    %vm1643 = vc.u32 %v1637, %v1639
    %v1644 = vadd.s32 %v1640, 1
    %v1645 = vsel %vm1643, %v1644, %v1640
    %v1646 = vadd.s32 %v1641, %v1645
    %v1647 = vadd.s32 %v1646, 536870912
    %v1648 = vshrl.u32 %v1647, 30
    %v1649 = vshll.u32 %v1648, 30
    %v1650 = vsub.s32 %v1646, %v1649
    %vm1651 = vcmp.lt.s32.totalorder %v1650, 0
    %v1652 = vsub.s32 0, %v1650
    %v1653 = vsel %vm1651, %v1652, %v1650
    %v1654 = vclz %v1653
    %v1655 = vsub.s32 %v1654, 2
    %vm1656 = vcmp.gt.s32.totalorder 0, %v1655
    %v1657 = vsel %vm1656, 0, %v1655
    %v1658 = vsub.s32 32, %v1657
    %v1659 = vshll.u32 %v1650, %v1657
    %v1660 = vshrl.u32 %v1642, %v1658
    %v1661 = vor.u32 %v1659, %v1660
    %v1662 = vsub.s32 4294967266, %v1657
    %v1663 = vadd.s32 %v1662, 127
    %v1664 = vshll.u32 %v1663, 23
    %v1665 = vor.u32 4788187, %v1664
    %v1666 = vand.u32 2147483647, %v1665
    %v1668 = vcvt.s32.f32 %v1661
    %v1669 = vmul.f32 %v1668, %v1666
    %v1670 = vxor.u32 %v1669, 2147483648
    %v1671 = vsel %vm1588, %v1670, %v1669
    %v1672 = vsub.s32 4, %v1648
    %v1673 = vsel %vm1588, %v1672, %v1648
    %v1674 = vsel %vm1587, %v841, %v1671
    %v1675 = vsel %vm1587, 0, %v1673
    %v1676 = vcosq.f32.pop %v1674
    %v1677 = vsinq.f32.pop %v1674
    %vm1678 = vweird.f32 %v841
    %v1679 = vadd.s32 %v1675, 3
    %v1680 = vand.u32 %v1679, 3
    %vm1681 = vcmp.lt.s32.totalorder %v1680, 2
    %vm1682 = vcmp.eq.s32.totalorder %v1680, 0
    %v1683 = vxor.u32 %v1677, 2147483648
    %v1684 = vsel %vm1682, %v1676, %v1683
    %vm1685 = vcmp.eq.s32.totalorder %v1680, 2
    %v1686 = vxor.u32 %v1676, 2147483648
    %v1687 = vsel %vm1685, %v1686, %v1677
    %v1688 = vsel %vm1681, %v1684, %v1687
    %v1689 = vsel %vm1678, nan, %v1688
    %v1694 = vrot.slane %v1377, 4
    %v1695 = vrot.slane %v1481, 4
    %v1696 = vrot.slane %v1585, 4
    %v1697 = vrot.slane %v1689, 4
    %v1702 = vmul.f32 %v842, %v1694
    %v1703 = vmul.f32 %v843, %v1695
    %v1704 = vmul.f32 %v844, %v1696
    %v1705 = vmul.f32 %v845, %v1697
    %v1706 = vmul.f32 %v1702, %v54
    %v1707 = vmul.f32 %v1703, %v62
    %v1708 = vmul.f32 %v1704, %v55
    %v1709 = vmul.f32 %v1705, %v63
    %v1710 = vadd.f32 %v1706, %v1270
    %v1711 = vadd.f32 %v1707, %v1271
    %v1712 = vadd.f32 %v1708, %v1272
    %v1713 = vadd.f32 %v1709, %v1273
    %v1714 = vmul.f32 %v1270, %v54
    %v1715 = vmul.f32 %v1271, %v62
    %v1716 = vmul.f32 %v1272, %v55
    %v1717 = vmul.f32 %v1273, %v63
    %v1718 = vsub.f32 %v1714, %v1702
    %v1719 = vsub.f32 %v1715, %v1703
    %v1720 = vsub.f32 %v1716, %v1704
    %v1721 = vsub.f32 %v1717, %v1705
    %v1722 = vld [vmem:[%s5] sm:$0xf]
    %v1723 = vpack.c.bf16 %v1710, %v1710
    %v1724 = vpack.c.bf16 %v1711, %v1711
    %v1725 = vpack.c.bf16 %v1712, %v1712
    %v1726 = vpack.c.bf16 %v1713, %v1713
    %v1727 = vld [vmem:[%s6] sm:$0xf]
    %v1729 = vsel %vm71, %v1727, 0
    %v1732 = vsel %vm75, %v1723, 0
    %v1735 = vsel %vm75, %v1724, 0
    %v1738 = vsel %vm75, %v1725, 0
    %v1741 = vsel %vm75, %v1726, 0
    %1743 = vmatprep.subr.bf16.mxu0 %v1735
    %1744 = vmatpush1.bf16.msra.mxu0 %v1732
    %1745 = vmatprep.subr.bf16.mxu0 0
    %1746 = vmatpush1.bf16.msra.mxu0 0
    %1747 = vmatprep.subr.bf16.mxu0 0
    %1748 = vmatpush1.bf16.msra.mxu0 0
    %1749 = vmatprep.subr.bf16.mxu0 0
    %1750 = vmatpush1.bf16.msra.mxu0 0
    %1751 = vmatprep.subr.bf16.mxu0 0
    %1752 = vmatpush1.bf16.msra.mxu0 0
    %1753 = vmatprep.subr.bf16.mxu0 0
    %1754 = vmatpush1.bf16.msra.mxu0 0
    %1755 = vmatprep.subr.bf16.mxu0 0
    %1756 = vmatpush1.bf16.msra.mxu0 0
    %1757 = vmatprep.subr.bf16.mxu0 0
    %1758 = vmatpush1.bf16.msra.mxu0 0
    %1759 = vmatprep.subr.bf16.mxu0 0
    %1760 = vmatpush1.bf16.msra.mxu0 0
    %1761 = vmatprep.subr.bf16.mxu0 0
    %1762 = vmatpush1.bf16.msra.mxu0 0
    %1763 = vmatprep.subr.bf16.mxu0 0
    %1764 = vmatpush1.bf16.msra.mxu0 0
    %1765 = vmatprep.subr.bf16.mxu0 0
    %1766 = vmatpush1.bf16.msra.mxu0 0
    %1767 = vmatprep.subr.bf16.mxu0 0
    %1768 = vmatpush1.bf16.msra.mxu0 0
    %1769 = vmatprep.subr.bf16.mxu0 0
    %1770 = vmatpush1.bf16.msra.mxu0 0
    %1771 = vmatprep.subr.bf16.mxu0 0
    %1772 = vmatpush1.bf16.msra.mxu0 0
    %1773 = vmatprep.subr.bf16.mxu0 0
    %1774 = vmatpush1.bf16.msra.mxu0 0
    %1775 = vmatprep.mubr.bf16.mxu0 0
    %1776 = vmatmul.mubr.bf16.gmra.mrb[0].mxu0 %v1729
    %v1777 = vpop.f32.mrb[0].mxu0
    %v1778 = vadd.f32 0.0, %v1777
    %v1779 = vpop.f32.mrb[0].mxu0
    %v1780 = vadd.f32 0.0, %v1779
    %v1781 = vpop.f32.mrb[0].mxu0
    %v1782 = vpop.f32.mrb[0].mxu0
    %1783 = vdwg.mxu0
    %1784 = vmatprep.subr.bf16.mxu0 %v1741
    %1785 = vmatpush1.bf16.msra.mxu0 %v1738
    %1786 = vmatprep.subr.bf16.mxu0 0
    %1787 = vmatpush1.bf16.msra.mxu0 0
    %1788 = vmatprep.subr.bf16.mxu0 0
    %1789 = vmatpush1.bf16.msra.mxu0 0
    %1790 = vmatprep.subr.bf16.mxu0 0
    %1791 = vmatpush1.bf16.msra.mxu0 0
    %1792 = vmatprep.subr.bf16.mxu0 0
    %1793 = vmatpush1.bf16.msra.mxu0 0
    %1794 = vmatprep.subr.bf16.mxu0 0
    %1795 = vmatpush1.bf16.msra.mxu0 0
    %1796 = vmatprep.subr.bf16.mxu0 0
    %1797 = vmatpush1.bf16.msra.mxu0 0
    %1798 = vmatprep.subr.bf16.mxu0 0
    %1799 = vmatpush1.bf16.msra.mxu0 0
    %1800 = vmatprep.subr.bf16.mxu0 0
    %1801 = vmatpush1.bf16.msra.mxu0 0
    %1802 = vmatprep.subr.bf16.mxu0 0
    %1803 = vmatpush1.bf16.msra.mxu0 0
    %1804 = vmatprep.subr.bf16.mxu0 0
    %1805 = vmatpush1.bf16.msra.mxu0 0
    %1806 = vmatprep.subr.bf16.mxu0 0
    %1807 = vmatpush1.bf16.msra.mxu0 0
    %1808 = vmatprep.subr.bf16.mxu0 0
    %1809 = vmatpush1.bf16.msra.mxu0 0
    %1810 = vmatprep.subr.bf16.mxu0 0
    %1811 = vmatpush1.bf16.msra.mxu0 0
    %1812 = vmatprep.subr.bf16.mxu0 0
    %1813 = vmatpush1.bf16.msra.mxu0 0
    %1814 = vmatprep.subr.bf16.mxu0 0
    %1815 = vmatpush1.bf16.msra.mxu0 0
    %1816 = vmatprep.mubr.bf16.mxu0 0
    %1817 = vmatmul.mubr.bf16.gmra.mrb[0].mxu0 %v1729
    %v1818 = vpop.f32.mrb[0].mxu0
    %v1819 = vadd.f32 0.0, %v1818
    %v1820 = vpop.f32.mrb[0].mxu0
    %v1821 = vadd.f32 0.0, %v1820
    %v1822 = vpop.f32.mrb[0].mxu0
    %v1823 = vpop.f32.mrb[0].mxu0
    %1824 = vdwg.mxu0
    %v1826 = vsel %vm71, %v1722, 0
    %1828 = vmatprep.subr.bf16.mxu0 %v80
    %1829 = vmatpush1.bf16.msra.mxu0 %v77
    %1830 = vmatprep.subr.bf16.mxu0 0
    %1831 = vmatpush1.bf16.msra.mxu0 0
    %1832 = vmatprep.subr.bf16.mxu0 0
    %1833 = vmatpush1.bf16.msra.mxu0 0
    %1834 = vmatprep.subr.bf16.mxu0 0
    %1835 = vmatpush1.bf16.msra.mxu0 0
    %1836 = vmatprep.subr.bf16.mxu0 0
    %1837 = vmatpush1.bf16.msra.mxu0 0
    %1838 = vmatprep.subr.bf16.mxu0 0
    %1839 = vmatpush1.bf16.msra.mxu0 0
    %1840 = vmatprep.subr.bf16.mxu0 0
    %1841 = vmatpush1.bf16.msra.mxu0 0
    %1842 = vmatprep.subr.bf16.mxu0 0
    %1843 = vmatpush1.bf16.msra.mxu0 0
    %1844 = vmatprep.subr.bf16.mxu0 0
    %1845 = vmatpush1.bf16.msra.mxu0 0
    %1846 = vmatprep.subr.bf16.mxu0 0
    %1847 = vmatpush1.bf16.msra.mxu0 0
    %1848 = vmatprep.subr.bf16.mxu0 0
    %1849 = vmatpush1.bf16.msra.mxu0 0
    %1850 = vmatprep.subr.bf16.mxu0 0
    %1851 = vmatpush1.bf16.msra.mxu0 0
    %1852 = vmatprep.subr.bf16.mxu0 0
    %1853 = vmatpush1.bf16.msra.mxu0 0
    %1854 = vmatprep.subr.bf16.mxu0 0
    %1855 = vmatpush1.bf16.msra.mxu0 0
    %1856 = vmatprep.subr.bf16.mxu0 0
    %1857 = vmatpush1.bf16.msra.mxu0 0
    %1858 = vmatprep.subr.bf16.mxu0 0
    %1859 = vmatpush1.bf16.msra.mxu0 0
    %1860 = vmatprep.mubr.bf16.mxu0 0
    %1861 = vmatmul.mubr.bf16.gmra.mrb[0].mxu0 %v1826
    %v1862 = vpop.f32.mrb[0].mxu0
    %v1863 = vadd.f32 %v1778, %v1862
    %v1864 = vpop.f32.mrb[0].mxu0
    %v1865 = vadd.f32 %v1780, %v1864
    %v1866 = vpop.f32.mrb[0].mxu0
    %v1867 = vpop.f32.mrb[0].mxu0
    %1868 = vdwg.mxu0
    %1869 = vmatprep.subr.bf16.mxu0 %v86
    %1870 = vmatpush1.bf16.msra.mxu0 %v83
    %1871 = vmatprep.subr.bf16.mxu0 0
    %1872 = vmatpush1.bf16.msra.mxu0 0
    %1873 = vmatprep.subr.bf16.mxu0 0
    %1874 = vmatpush1.bf16.msra.mxu0 0
    %1875 = vmatprep.subr.bf16.mxu0 0
    %1876 = vmatpush1.bf16.msra.mxu0 0
    %1877 = vmatprep.subr.bf16.mxu0 0
    %1878 = vmatpush1.bf16.msra.mxu0 0
    %1879 = vmatprep.subr.bf16.mxu0 0
    %1880 = vmatpush1.bf16.msra.mxu0 0
    %1881 = vmatprep.subr.bf16.mxu0 0
    %1882 = vmatpush1.bf16.msra.mxu0 0
    %1883 = vmatprep.subr.bf16.mxu0 0
    %1884 = vmatpush1.bf16.msra.mxu0 0
    %1885 = vmatprep.subr.bf16.mxu0 0
    %1886 = vmatpush1.bf16.msra.mxu0 0
    %1887 = vmatprep.subr.bf16.mxu0 0
    %1888 = vmatpush1.bf16.msra.mxu0 0
    %1889 = vmatprep.subr.bf16.mxu0 0
    %1890 = vmatpush1.bf16.msra.mxu0 0
    %1891 = vmatprep.subr.bf16.mxu0 0
    %1892 = vmatpush1.bf16.msra.mxu0 0
    %1893 = vmatprep.subr.bf16.mxu0 0
    %1894 = vmatpush1.bf16.msra.mxu0 0
    %1895 = vmatprep.subr.bf16.mxu0 0
    %1896 = vmatpush1.bf16.msra.mxu0 0
    %1897 = vmatprep.subr.bf16.mxu0 0
    %1898 = vmatpush1.bf16.msra.mxu0 0
    %1899 = vmatprep.subr.bf16.mxu0 0
    %1900 = vmatpush1.bf16.msra.mxu0 0
    %1901 = vmatprep.mubr.bf16.mxu0 0
    %1902 = vmatmul.mubr.bf16.gmra.mrb[0].mxu0 %v1826
    %v1903 = vpop.f32.mrb[0].mxu0
    %v1904 = vadd.f32 %v1819, %v1903
    %v1905 = vpop.f32.mrb[0].mxu0
    %v1906 = vadd.f32 %v1821, %v1905
    %v1907 = vpop.f32.mrb[0].mxu0
    %v1908 = vpop.f32.mrb[0].mxu0
    %1909 = vdwg.mxu0
    %v1910 = vpack.c.bf16 %v1718, %v1718
    %v1911 = vpack.c.bf16 %v1719, %v1719
    %v1912 = vpack.c.bf16 %v1720, %v1720
    %v1913 = vpack.c.bf16 %v1721, %v1721
    %v1914 = vld [vmem:[%s7] sm:$0xf]
    %v1916 = vsel %vm71, %v1914, 0
    %v1919 = vsel %vm75, %v1910, 0
    %v1922 = vsel %vm75, %v1911, 0
    %v1925 = vsel %vm75, %v1912, 0
    %v1928 = vsel %vm75, %v1913, 0
    %1930 = vmatprep.subr.bf16.mxu0 %v1922
    %1931 = vmatpush1.bf16.msra.mxu0 %v1919
    %1932 = vmatprep.subr.bf16.mxu0 0
    %1933 = vmatpush1.bf16.msra.mxu0 0
    %1934 = vmatprep.subr.bf16.mxu0 0
    %1935 = vmatpush1.bf16.msra.mxu0 0
    %1936 = vmatprep.subr.bf16.mxu0 0
    %1937 = vmatpush1.bf16.msra.mxu0 0
    %1938 = vmatprep.subr.bf16.mxu0 0
    %1939 = vmatpush1.bf16.msra.mxu0 0
    %1940 = vmatprep.subr.bf16.mxu0 0
    %1941 = vmatpush1.bf16.msra.mxu0 0
    %1942 = vmatprep.subr.bf16.mxu0 0
    %1943 = vmatpush1.bf16.msra.mxu0 0
    %1944 = vmatprep.subr.bf16.mxu0 0
    %1945 = vmatpush1.bf16.msra.mxu0 0
    %1946 = vmatprep.subr.bf16.mxu0 0
    %1947 = vmatpush1.bf16.msra.mxu0 0
    %1948 = vmatprep.subr.bf16.mxu0 0
    %1949 = vmatpush1.bf16.msra.mxu0 0
    %1950 = vmatprep.subr.bf16.mxu0 0
    %1951 = vmatpush1.bf16.msra.mxu0 0
    %1952 = vmatprep.subr.bf16.mxu0 0
    %1953 = vmatpush1.bf16.msra.mxu0 0
    %1954 = vmatprep.subr.bf16.mxu0 0
    %1955 = vmatpush1.bf16.msra.mxu0 0
    %1956 = vmatprep.subr.bf16.mxu0 0
    %1957 = vmatpush1.bf16.msra.mxu0 0
    %1958 = vmatprep.subr.bf16.mxu0 0
    %1959 = vmatpush1.bf16.msra.mxu0 0
    %1960 = vmatprep.subr.bf16.mxu0 0
    %1961 = vmatpush1.bf16.msra.mxu0 0
    %1962 = vmatprep.mubr.bf16.mxu0 0
    %1963 = vmatmul.mubr.bf16.gmra.mrb[0].mxu0 %v1916
    %v1964 = vpop.f32.mrb[0].mxu0
    %v1965 = vadd.f32 0.0, %v1964
    %v1966 = vpop.f32.mrb[0].mxu0
    %v1967 = vadd.f32 0.0, %v1966
    %v1968 = vpop.f32.mrb[0].mxu0
    %v1969 = vpop.f32.mrb[0].mxu0
    %1970 = vdwg.mxu0
    %1971 = vmatprep.subr.bf16.mxu0 %v1928
    %1972 = vmatpush1.bf16.msra.mxu0 %v1925
    %1973 = vmatprep.subr.bf16.mxu0 0
    %1974 = vmatpush1.bf16.msra.mxu0 0
    %1975 = vmatprep.subr.bf16.mxu0 0
    %1976 = vmatpush1.bf16.msra.mxu0 0
    %1977 = vmatprep.subr.bf16.mxu0 0
    %1978 = vmatpush1.bf16.msra.mxu0 0
    %1979 = vmatprep.subr.bf16.mxu0 0
    %1980 = vmatpush1.bf16.msra.mxu0 0
    %1981 = vmatprep.subr.bf16.mxu0 0
    %1982 = vmatpush1.bf16.msra.mxu0 0
    %1983 = vmatprep.subr.bf16.mxu0 0
    %1984 = vmatpush1.bf16.msra.mxu0 0
    %1985 = vmatprep.subr.bf16.mxu0 0
    %1986 = vmatpush1.bf16.msra.mxu0 0
    %1987 = vmatprep.subr.bf16.mxu0 0
    %1988 = vmatpush1.bf16.msra.mxu0 0
    %1989 = vmatprep.subr.bf16.mxu0 0
    %1990 = vmatpush1.bf16.msra.mxu0 0
    %1991 = vmatprep.subr.bf16.mxu0 0
    %1992 = vmatpush1.bf16.msra.mxu0 0
    %1993 = vmatprep.subr.bf16.mxu0 0
    %1994 = vmatpush1.bf16.msra.mxu0 0
    %1995 = vmatprep.subr.bf16.mxu0 0
    %1996 = vmatpush1.bf16.msra.mxu0 0
    %1997 = vmatprep.subr.bf16.mxu0 0
    %1998 = vmatpush1.bf16.msra.mxu0 0
    %1999 = vmatprep.subr.bf16.mxu0 0
    %2000 = vmatpush1.bf16.msra.mxu0 0
    %2001 = vmatprep.subr.bf16.mxu0 0
    %2002 = vmatpush1.bf16.msra.mxu0 0
    %2003 = vmatprep.mubr.bf16.mxu0 0
    %2004 = vmatmul.mubr.bf16.gmra.mrb[0].mxu0 %v1916
    %v2005 = vpop.f32.mrb[0].mxu0
    %v2006 = vadd.f32 0.0, %v2005
    %v2007 = vpop.f32.mrb[0].mxu0
    %v2008 = vadd.f32 0.0, %v2007
    %v2009 = vpop.f32.mrb[0].mxu0
    %v2010 = vpop.f32.mrb[0].mxu0
    %2011 = vdwg.mxu0
    %v2012 = vadd.f32 %v1863, %v1965
    %v2013 = vadd.f32 %v1865, %v1967
    %v2014 = vadd.f32 %v1904, %v2006
    %v2015 = vadd.f32 %v1906, %v2008
    %v2016 = vld [vmem:[%s8] sm:$0xf]
    %v2018 = vsel %vm738, %v2016, 0
    %2020 = vmatprep.subr.bf16.mxu0 %v748
    %2021 = vmatpush1.bf16.msra.mxu0 %v745
    %2022 = vmatprep.subr.bf16.mxu0 0
    %2023 = vmatpush1.bf16.msra.mxu0 0
    %2024 = vmatprep.subr.bf16.mxu0 0
    %2025 = vmatpush1.bf16.msra.mxu0 0
    %2026 = vmatprep.subr.bf16.mxu0 0
    %2027 = vmatpush1.bf16.msra.mxu0 0
    %2028 = vmatprep.subr.bf16.mxu0 0
    %2029 = vmatpush1.bf16.msra.mxu0 0
    %2030 = vmatprep.subr.bf16.mxu0 0
    %2031 = vmatpush1.bf16.msra.mxu0 0
    %2032 = vmatprep.subr.bf16.mxu0 0
    %2033 = vmatpush1.bf16.msra.mxu0 0
    %2034 = vmatprep.subr.bf16.mxu0 0
    %2035 = vmatpush1.bf16.msra.mxu0 0
    %2036 = vmatprep.subr.bf16.mxu0 0
    %2037 = vmatpush1.bf16.msra.mxu0 0
    %2038 = vmatprep.subr.bf16.mxu0 0
    %2039 = vmatpush1.bf16.msra.mxu0 0
    %2040 = vmatprep.subr.bf16.mxu0 0
    %2041 = vmatpush1.bf16.msra.mxu0 0
    %2042 = vmatprep.subr.bf16.mxu0 0
    %2043 = vmatpush1.bf16.msra.mxu0 0
    %2044 = vmatprep.subr.bf16.mxu0 0
    %2045 = vmatpush1.bf16.msra.mxu0 0
    %2046 = vmatprep.subr.bf16.mxu0 0
    %2047 = vmatpush1.bf16.msra.mxu0 0
    %2048 = vmatprep.subr.bf16.mxu0 0
    %2049 = vmatpush1.bf16.msra.mxu0 0
    %2050 = vmatprep.subr.bf16.mxu0 0
    %2051 = vmatpush1.bf16.msra.mxu0 0
    %2052 = vmatprep.mubr.bf16.mxu0 0
    %2053 = vmatmul.mubr.bf16.gmra.mrb[0].mxu0 %v2018
    %v2054 = vpop.f32.mrb[0].mxu0
    %v2055 = vadd.f32 0.0, %v2054
    %v2056 = vpop.f32.mrb[0].mxu0
    %v2057 = vadd.f32 0.0, %v2056
    %v2058 = vpop.f32.mrb[0].mxu0
    %v2059 = vpop.f32.mrb[0].mxu0
    %2060 = vdwg.mxu0
    %2061 = vmatprep.subr.bf16.mxu0 %v754
    %2062 = vmatpush1.bf16.msra.mxu0 %v751
    %2063 = vmatprep.subr.bf16.mxu0 0
    %2064 = vmatpush1.bf16.msra.mxu0 0
    %2065 = vmatprep.subr.bf16.mxu0 0
    %2066 = vmatpush1.bf16.msra.mxu0 0
    %2067 = vmatprep.subr.bf16.mxu0 0
    %2068 = vmatpush1.bf16.msra.mxu0 0
    %2069 = vmatprep.subr.bf16.mxu0 0
    %2070 = vmatpush1.bf16.msra.mxu0 0
    %2071 = vmatprep.subr.bf16.mxu0 0
    %2072 = vmatpush1.bf16.msra.mxu0 0
    %2073 = vmatprep.subr.bf16.mxu0 0
    %2074 = vmatpush1.bf16.msra.mxu0 0
    %2075 = vmatprep.subr.bf16.mxu0 0
    %2076 = vmatpush1.bf16.msra.mxu0 0
    %2077 = vmatprep.subr.bf16.mxu0 0
    %2078 = vmatpush1.bf16.msra.mxu0 0
    %2079 = vmatprep.subr.bf16.mxu0 0
    %2080 = vmatpush1.bf16.msra.mxu0 0
    %2081 = vmatprep.subr.bf16.mxu0 0
    %2082 = vmatpush1.bf16.msra.mxu0 0
    %2083 = vmatprep.subr.bf16.mxu0 0
    %2084 = vmatpush1.bf16.msra.mxu0 0
    %2085 = vmatprep.subr.bf16.mxu0 0
    %2086 = vmatpush1.bf16.msra.mxu0 0
    %2087 = vmatprep.subr.bf16.mxu0 0
    %2088 = vmatpush1.bf16.msra.mxu0 0
    %2089 = vmatprep.subr.bf16.mxu0 0
    %2090 = vmatpush1.bf16.msra.mxu0 0
    %2091 = vmatprep.subr.bf16.mxu0 0
    %2092 = vmatpush1.bf16.msra.mxu0 0
    %2093 = vmatprep.mubr.bf16.mxu0 0
    %2094 = vmatmul.mubr.bf16.gmra.mrb[0].mxu0 %v2018
    %v2095 = vpop.f32.mrb[0].mxu0
    %v2096 = vadd.f32 0.0, %v2095
    %v2097 = vpop.f32.mrb[0].mxu0
    %v2098 = vadd.f32 0.0, %v2097
    %v2099 = vpop.f32.mrb[0].mxu0
    %v2100 = vpop.f32.mrb[0].mxu0
    %2101 = vdwg.mxu0
    %v2102 = vadd.f32 %v2012, %v2055
    %v2103 = vadd.f32 %v2013, %v2057
    %v2104 = vadd.f32 %v2014, %v2096
    %v2105 = vadd.f32 %v2015, %v2098
    %v2106 = vmax.f32 %v2102, 0.0
    %v2107 = vmax.f32 %v2103, 0.0
    %v2108 = vmax.f32 %v2104, 0.0
    %v2109 = vmax.f32 %v2105, 0.0
    %v2110 = vpack.c.bf16 %v2106, %v2106
    %v2111 = vpack.c.bf16 %v2107, %v2107
    %v2112 = vpack.c.bf16 %v2108, %v2108
    %v2113 = vpack.c.bf16 %v2109, %v2109
    %2114 = vrot.lane.b32.xlu0 %v2106, 17
    %v2115 = vpop.permute.xlu0 %2114
    %2116 = vrot.lane.b32.xlu0 %v2107, 17
    %v2117 = vpop.permute.xlu0 %2116
    %2118 = vrot.lane.b32.xlu0 %v2108, 17
    %v2119 = vpop.permute.xlu0 %2118
    %2120 = vrot.lane.b32.xlu0 %v2109, 17
    %v2121 = vpop.permute.xlu0 %2120
    %v2122 = vsel %vm188, %v2119, %v2121
    %v2123 = vsel %vm188, %v2117, %v2119
    %v2124 = vsel %vm188, %v2115, %v2117
    %v2125 = vsel %vm188, %v2121, %v2115
    %v2126 = vpack.c.bf16 %v2125, %v2125
    %v2127 = vpack.c.bf16 %v2124, %v2124
    %v2128 = vpack.c.bf16 %v2123, %v2123
    %v2129 = vpack.c.bf16 %v2122, %v2122
    %v2130 = vpack.i.b16 %v203, %v203
    %v2132 = vlaneseq
    %v2133 = vshrl.u32 %v2132, 7
    %v2134 = vsub.s32 0, %v2133
    %v2135 = vrot.slane %v2130, %v2134
    %v2136 = vpack.i.b16 %v204, %v204
    %v2138 = vlaneseq
    %v2139 = vshrl.u32 %v2138, 7
    %v2140 = vsub.s32 0, %v2139
    %v2141 = vrot.slane %v2136, %v2140
    %v2142 = vpack.i.b16 %v205, %v205
    %v2144 = vlaneseq
    %v2145 = vshrl.u32 %v2144, 7
    %v2146 = vsub.s32 0, %v2145
    %v2147 = vrot.slane %v2142, %v2146
    %v2148 = vpack.i.b16 %v206, %v206
    %v2150 = vlaneseq
    %v2151 = vshrl.u32 %v2150, 7
    %v2152 = vsub.s32 0, %v2151
    %v2153 = vrot.slane %v2148, %v2152
    %v2154 = vmul.bf16 %v2126, %v2135
    %v2155 = vmul.bf16 %v2127, %v2141
    %v2156 = vmul.bf16 %v2128, %v2147
    %v2157 = vmul.bf16 %v2129, %v2153
    %2158 = vrot.lane.b32.xlu0 %v2106, 16
    %v2159 = vpop.permute.xlu0 %2158
    %2160 = vrot.lane.b32.xlu0 %v2107, 16
    %v2161 = vpop.permute.xlu0 %2160
    %2162 = vrot.lane.b32.xlu0 %v2108, 16
    %v2163 = vpop.permute.xlu0 %2162
    %2164 = vrot.lane.b32.xlu0 %v2109, 16
    %v2165 = vpop.permute.xlu0 %2164
    %v2166 = vsel %vm223, %v2163, %v2165
    %v2167 = vsel %vm223, %v2161, %v2163
    %v2168 = vsel %vm223, %v2159, %v2161
    %v2169 = vsel %vm223, %v2165, %v2159
    %v2170 = vpack.c.bf16 %v2169, %v2169
    %v2171 = vpack.c.bf16 %v2168, %v2168
    %v2172 = vpack.c.bf16 %v2167, %v2167
    %v2173 = vpack.c.bf16 %v2166, %v2166
    %v2174 = vpack.i.b16 %v233, %v233
    %v2176 = vlaneseq
    %v2177 = vshrl.u32 %v2176, 7
    %v2178 = vsub.s32 0, %v2177
    %v2179 = vrot.slane %v2174, %v2178
    %v2180 = vpack.i.b16 %v236, %v236
    %v2182 = vlaneseq
    %v2183 = vshrl.u32 %v2182, 7
    %v2184 = vsub.s32 0, %v2183
    %v2185 = vrot.slane %v2180, %v2184
    %v2186 = vpack.i.b16 %v239, %v239
    %v2188 = vlaneseq
    %v2189 = vshrl.u32 %v2188, 7
    %v2190 = vsub.s32 0, %v2189
    %v2191 = vrot.slane %v2186, %v2190
    %v2192 = vpack.i.b16 %v242, %v242
    %v2194 = vlaneseq
    %v2195 = vshrl.u32 %v2194, 7
    %v2196 = vsub.s32 0, %v2195
    %v2197 = vrot.slane %v2192, %v2196
    %v2198 = vmul.bf16 %v2170, %v2179
    %v2199 = vmul.bf16 %v2171, %v2185
    %v2200 = vmul.bf16 %v2172, %v2191
    %v2201 = vmul.bf16 %v2173, %v2197
    %2202 = vrot.lane.b32.xlu0 %v2106, 15
    %v2203 = vpop.permute.xlu0 %2202
    %2204 = vrot.lane.b32.xlu0 %v2107, 15
    %v2205 = vpop.permute.xlu0 %2204
    %2206 = vrot.lane.b32.xlu0 %v2108, 15
    %v2207 = vpop.permute.xlu0 %2206
    %2208 = vrot.lane.b32.xlu0 %v2109, 15
    %v2209 = vpop.permute.xlu0 %2208
    %v2210 = vsel %vm260, %v2207, %v2209
    %v2211 = vsel %vm260, %v2205, %v2207
    %v2212 = vsel %vm260, %v2203, %v2205
    %v2213 = vsel %vm260, %v2209, %v2203
    %v2214 = vpack.c.bf16 %v2213, %v2213
    %v2215 = vpack.c.bf16 %v2212, %v2212
    %v2216 = vpack.c.bf16 %v2211, %v2211
    %v2217 = vpack.c.bf16 %v2210, %v2210
    %v2218 = vlaneseq
    %v2219 = vshrl.u32 %v2218, 7
    %v2220 = vsub.s32 1, %v2219
    %v2221 = vrot.slane %v2130, %v2220
    %v2222 = vlaneseq
    %v2223 = vshrl.u32 %v2222, 7
    %v2224 = vsub.s32 1, %v2223
    %v2225 = vrot.slane %v2136, %v2224
    %v2226 = vlaneseq
    %v2227 = vshrl.u32 %v2226, 7
    %v2228 = vsub.s32 1, %v2227
    %v2229 = vrot.slane %v2142, %v2228
    %v2230 = vlaneseq
    %v2231 = vshrl.u32 %v2230, 7
    %v2232 = vsub.s32 1, %v2231
    %v2233 = vrot.slane %v2148, %v2232
    %v2234 = vmul.bf16 %v2214, %v2221
    %v2235 = vmul.bf16 %v2215, %v2225
    %v2236 = vmul.bf16 %v2216, %v2229
    %v2237 = vmul.bf16 %v2217, %v2233
    %2238 = vrot.lane.b32.xlu0 %v2106, 1
    %v2239 = vpop.permute.xlu0 %2238
    %2240 = vrot.lane.b32.xlu0 %v2107, 1
    %v2241 = vpop.permute.xlu0 %2240
    %2242 = vrot.lane.b32.xlu0 %v2108, 1
    %v2243 = vpop.permute.xlu0 %2242
    %2244 = vrot.lane.b32.xlu0 %v2109, 1
    %v2245 = vpop.permute.xlu0 %2244
    %v2246 = vsel %vm289, %v2243, %v2245
    %v2247 = vsel %vm289, %v2241, %v2243
    %v2248 = vsel %vm289, %v2239, %v2241
    %v2249 = vsel %vm289, %v2245, %v2239
    %v2250 = vpack.c.bf16 %v2249, %v2249
    %v2251 = vpack.c.bf16 %v2248, %v2248
    %v2252 = vpack.c.bf16 %v2247, %v2247
    %v2253 = vpack.c.bf16 %v2246, %v2246
    %v2254 = vlaneseq
    %v2255 = vshrl.u32 %v2254, 7
    %v2256 = vsub.s32 1, %v2255
    %v2257 = vrot.slane %v2174, %v2256
    %v2258 = vlaneseq
    %v2259 = vshrl.u32 %v2258, 7
    %v2260 = vsub.s32 1, %v2259
    %v2261 = vrot.slane %v2180, %v2260
    %v2262 = vlaneseq
    %v2263 = vshrl.u32 %v2262, 7
    %v2264 = vsub.s32 1, %v2263
    %v2265 = vrot.slane %v2186, %v2264
    %v2266 = vlaneseq
    %v2267 = vshrl.u32 %v2266, 7
    %v2268 = vsub.s32 1, %v2267
    %v2269 = vrot.slane %v2192, %v2268
    %v2270 = vmul.bf16 %v2250, %v2257
    %v2271 = vmul.bf16 %v2251, %v2261
    %v2272 = vmul.bf16 %v2252, %v2265
    %v2273 = vmul.bf16 %v2253, %v2269
    %2274 = vrot.lane.b32.xlu0 %v2106, 127
    %v2275 = vpop.permute.xlu0 %2274
    %2276 = vrot.lane.b32.xlu0 %v2107, 127
    %v2277 = vpop.permute.xlu0 %2276
    %2278 = vrot.lane.b32.xlu0 %v2108, 127
    %v2279 = vpop.permute.xlu0 %2278
    %2280 = vrot.lane.b32.xlu0 %v2109, 127
    %v2281 = vpop.permute.xlu0 %2280
    %v2282 = vsel %vm318, %v2279, %v2281
    %v2283 = vsel %vm318, %v2277, %v2279
    %v2284 = vsel %vm318, %v2275, %v2277
    %v2285 = vsel %vm318, %v2281, %v2275
    %v2286 = vpack.c.bf16 %v2284, %v2284
    %v2287 = vpack.c.bf16 %v2283, %v2283
    %v2288 = vpack.c.bf16 %v2282, %v2282
    %v2289 = vpack.c.bf16 %v2285, %v2285
    %v2290 = vlaneseq
    %v2291 = vshrl.u32 %v2290, 7
    %v2292 = vsub.s32 2, %v2291
    %v2293 = vrot.slane %v2174, %v2292
    %v2294 = vlaneseq
    %v2295 = vshrl.u32 %v2294, 7
    %v2296 = vsub.s32 2, %v2295
    %v2297 = vrot.slane %v2180, %v2296
    %v2298 = vlaneseq
    %v2299 = vshrl.u32 %v2298, 7
    %v2300 = vsub.s32 2, %v2299
    %v2301 = vrot.slane %v2186, %v2300
    %v2302 = vlaneseq
    %v2303 = vshrl.u32 %v2302, 7
    %v2304 = vsub.s32 2, %v2303
    %v2305 = vrot.slane %v2192, %v2304
    %v2306 = vmul.bf16 %v2286, %v2293
    %v2307 = vmul.bf16 %v2287, %v2297
    %v2308 = vmul.bf16 %v2288, %v2301
    %v2309 = vmul.bf16 %v2289, %v2305
    %2310 = vrot.lane.b32.xlu0 %v2106, 113
    %v2311 = vpop.permute.xlu0 %2310
    %2312 = vrot.lane.b32.xlu0 %v2107, 113
    %v2313 = vpop.permute.xlu0 %2312
    %2314 = vrot.lane.b32.xlu0 %v2108, 113
    %v2315 = vpop.permute.xlu0 %2314
    %2316 = vrot.lane.b32.xlu0 %v2109, 113
    %v2317 = vpop.permute.xlu0 %2316
    %v2318 = vsel %vm347, %v2315, %v2317
    %v2319 = vsel %vm347, %v2313, %v2315
    %v2320 = vsel %vm347, %v2311, %v2313
    %v2321 = vsel %vm347, %v2317, %v2311
    %v2322 = vpack.c.bf16 %v2320, %v2320
    %v2323 = vpack.c.bf16 %v2319, %v2319
    %v2324 = vpack.c.bf16 %v2318, %v2318
    %v2325 = vpack.c.bf16 %v2321, %v2321
    %v2326 = vlaneseq
    %v2327 = vshrl.u32 %v2326, 7
    %v2328 = vsub.s32 3, %v2327
    %v2329 = vrot.slane %v2130, %v2328
    %v2330 = vlaneseq
    %v2331 = vshrl.u32 %v2330, 7
    %v2332 = vsub.s32 3, %v2331
    %v2333 = vrot.slane %v2136, %v2332
    %v2334 = vlaneseq
    %v2335 = vshrl.u32 %v2334, 7
    %v2336 = vsub.s32 3, %v2335
    %v2337 = vrot.slane %v2142, %v2336
    %v2338 = vlaneseq
    %v2339 = vshrl.u32 %v2338, 7
    %v2340 = vsub.s32 3, %v2339
    %v2341 = vrot.slane %v2148, %v2340
    %v2342 = vmul.bf16 %v2322, %v2329
    %v2343 = vmul.bf16 %v2323, %v2333
    %v2344 = vmul.bf16 %v2324, %v2337
    %v2345 = vmul.bf16 %v2325, %v2341
    %2346 = vrot.lane.b32.xlu0 %v2106, 112
    %v2347 = vpop.permute.xlu0 %2346
    %2348 = vrot.lane.b32.xlu0 %v2107, 112
    %v2349 = vpop.permute.xlu0 %2348
    %2350 = vrot.lane.b32.xlu0 %v2108, 112
    %v2351 = vpop.permute.xlu0 %2350
    %2352 = vrot.lane.b32.xlu0 %v2109, 112
    %v2353 = vpop.permute.xlu0 %2352
    %v2354 = vsel %vm376, %v2351, %v2353
    %v2355 = vsel %vm376, %v2349, %v2351
    %v2356 = vsel %vm376, %v2347, %v2349
    %v2357 = vsel %vm376, %v2353, %v2347
    %v2358 = vpack.c.bf16 %v2356, %v2356
    %v2359 = vpack.c.bf16 %v2355, %v2355
    %v2360 = vpack.c.bf16 %v2354, %v2354
    %v2361 = vpack.c.bf16 %v2357, %v2357
    %v2362 = vlaneseq
    %v2363 = vshrl.u32 %v2362, 7
    %v2364 = vsub.s32 3, %v2363
    %v2365 = vrot.slane %v2174, %v2364
    %v2366 = vlaneseq
    %v2367 = vshrl.u32 %v2366, 7
    %v2368 = vsub.s32 3, %v2367
    %v2369 = vrot.slane %v2180, %v2368
    %v2370 = vlaneseq
    %v2371 = vshrl.u32 %v2370, 7
    %v2372 = vsub.s32 3, %v2371
    %v2373 = vrot.slane %v2186, %v2372
    %v2374 = vlaneseq
    %v2375 = vshrl.u32 %v2374, 7
    %v2376 = vsub.s32 3, %v2375
    %v2377 = vrot.slane %v2192, %v2376
    %v2378 = vmul.bf16 %v2358, %v2365
    %v2379 = vmul.bf16 %v2359, %v2369
    %v2380 = vmul.bf16 %v2360, %v2373
    %v2381 = vmul.bf16 %v2361, %v2377
    %2382 = vrot.lane.b32.xlu0 %v2106, 111
    %v2383 = vpop.permute.xlu0 %2382
    %2384 = vrot.lane.b32.xlu0 %v2107, 111
    %v2385 = vpop.permute.xlu0 %2384
    %2386 = vrot.lane.b32.xlu0 %v2108, 111
    %v2387 = vpop.permute.xlu0 %2386
    %2388 = vrot.lane.b32.xlu0 %v2109, 111
    %v2389 = vpop.permute.xlu0 %2388
    %v2390 = vsel %vm405, %v2387, %v2389
    %v2391 = vsel %vm405, %v2385, %v2387
    %v2392 = vsel %vm405, %v2383, %v2385
    %v2393 = vsel %vm405, %v2389, %v2383
    %v2394 = vpack.c.bf16 %v2392, %v2392
    %v2395 = vpack.c.bf16 %v2391, %v2391
    %v2396 = vpack.c.bf16 %v2390, %v2390
    %v2397 = vpack.c.bf16 %v2393, %v2393
    %v2399 = vpack.i.b16 %v420, %v420
    %v2401 = vlaneseq
    %v2402 = vshrl.u32 %v2401, 7
    %v2403 = vsub.s32 0, %v2402
    %v2404 = vrot.slane %v2399, %v2403
    %v2406 = vpack.i.b16 %v421, %v421
    %v2408 = vlaneseq
    %v2409 = vshrl.u32 %v2408, 7
    %v2410 = vsub.s32 0, %v2409
    %v2411 = vrot.slane %v2406, %v2410
    %v2413 = vpack.i.b16 %v422, %v422
    %v2415 = vlaneseq
    %v2416 = vshrl.u32 %v2415, 7
    %v2417 = vsub.s32 0, %v2416
    %v2418 = vrot.slane %v2413, %v2417
    %v2420 = vpack.i.b16 %v423, %v423
    %v2422 = vlaneseq
    %v2423 = vshrl.u32 %v2422, 7
    %v2424 = vsub.s32 0, %v2423
    %v2425 = vrot.slane %v2420, %v2424
    %v2426 = vmul.bf16 %v2394, %v2404
    %v2427 = vmul.bf16 %v2395, %v2411
    %v2428 = vmul.bf16 %v2396, %v2418
    %v2429 = vmul.bf16 %v2397, %v2425
    %v2434 = vrot.slane %v2198, 4
    %v2435 = vrot.slane %v2199, 4
    %v2436 = vrot.slane %v2200, 4
    %v2437 = vrot.slane %v2201, 4
    %v2442 = vrot.slane %v2270, 4
    %v2443 = vrot.slane %v2271, 4
    %v2444 = vrot.slane %v2272, 4
    %v2445 = vrot.slane %v2273, 4
    %v2450 = vrot.slane %v2306, 4
    %v2451 = vrot.slane %v2307, 4
    %v2452 = vrot.slane %v2308, 4
    %v2453 = vrot.slane %v2309, 4
    %v2458 = vrot.slane %v2378, 4
    %v2459 = vrot.slane %v2379, 4
    %v2460 = vrot.slane %v2380, 4
    %v2461 = vrot.slane %v2381, 4
    %v2464 = vsel %vm618, %v2154, %v2434
    %v2468 = vsel %vm618, %v2155, %v2435
    %v2472 = vsel %vm618, %v2156, %v2436
    %v2476 = vsel %vm618, %v2157, %v2437
    %v2480 = vsel %vm618, %v2234, %v2442
    %v2484 = vsel %vm618, %v2235, %v2443
    %v2488 = vsel %vm618, %v2236, %v2444
    %v2492 = vsel %vm618, %v2237, %v2445
    %v2496 = vsel %vm618, %v2110, %v2450
    %v2500 = vsel %vm618, %v2111, %v2451
    %v2504 = vsel %vm618, %v2112, %v2452
    %v2508 = vsel %vm618, %v2113, %v2453
    %v2512 = vsel %vm618, %v2342, %v2458
    %v2516 = vsel %vm618, %v2343, %v2459
    %v2520 = vsel %vm618, %v2344, %v2460
    %v2524 = vsel %vm618, %v2345, %v2461
    %v2526 = vld [vmem:[%s9] sm:$0xf]
    %vm2527 = vcmask 588800
    %v2529 = vsel %vm2527, %v2526, 0
    %v2532 = vsel %vm618, %v2426, 0
    %v2535 = vsel %vm618, %v2427, 0
    %v2538 = vsel %vm618, %v2428, 0
    %v2541 = vsel %vm618, %v2429, 0
    %2543 = vmatprep.subr.bf16.mxu0 %v2468
    %2544 = vmatpush1.bf16.msra.mxu0 %v2464
    %2545 = vmatprep.subr.bf16.mxu0 %v2484
    %2546 = vmatpush1.bf16.msra.mxu0 %v2480
    %2547 = vmatprep.subr.bf16.mxu0 %v2500
    %2548 = vmatpush1.bf16.msra.mxu0 %v2496
    %2549 = vmatprep.subr.bf16.mxu0 %v2516
    %2550 = vmatpush1.bf16.msra.mxu0 %v2512
    %2551 = vmatprep.subr.bf16.mxu0 %v2535
    %2552 = vmatpush1.bf16.msra.mxu0 %v2532
    %2553 = vmatprep.subr.bf16.mxu0 0
    %2554 = vmatpush1.bf16.msra.mxu0 0
    %2555 = vmatprep.subr.bf16.mxu0 0
    %2556 = vmatpush1.bf16.msra.mxu0 0
    %2557 = vmatprep.subr.bf16.mxu0 0
    %2558 = vmatpush1.bf16.msra.mxu0 0
    %2559 = vmatprep.subr.bf16.mxu0 0
    %2560 = vmatpush1.bf16.msra.mxu0 0
    %2561 = vmatprep.subr.bf16.mxu0 0
    %2562 = vmatpush1.bf16.msra.mxu0 0
    %2563 = vmatprep.subr.bf16.mxu0 0
    %2564 = vmatpush1.bf16.msra.mxu0 0
    %2565 = vmatprep.subr.bf16.mxu0 0
    %2566 = vmatpush1.bf16.msra.mxu0 0
    %2567 = vmatprep.subr.bf16.mxu0 0
    %2568 = vmatpush1.bf16.msra.mxu0 0
    %2569 = vmatprep.subr.bf16.mxu0 0
    %2570 = vmatpush1.bf16.msra.mxu0 0
    %2571 = vmatprep.subr.bf16.mxu0 0
    %2572 = vmatpush1.bf16.msra.mxu0 0
    %2573 = vmatprep.subr.bf16.mxu0 0
    %2574 = vmatpush1.bf16.msra.mxu0 0
    %2575 = vmatprep.mubr.bf16.mxu0 0
    %2576 = vmatmul.mubr.bf16.gmra.mrb[0].mxu0 %v2529
    %v2577 = vpop.f32.mrb[0].mxu0
    %v2578 = vadd.f32 0.0, %v2577
    %v2579 = vpop.f32.mrb[0].mxu0
    %v2580 = vadd.f32 0.0, %v2579
    %v2581 = vpop.f32.mrb[0].mxu0
    %v2582 = vpop.f32.mrb[0].mxu0
    %2583 = vdwg.mxu0
    %2584 = vmatprep.subr.bf16.mxu0 %v2476
    %2585 = vmatpush1.bf16.msra.mxu0 %v2472
    %2586 = vmatprep.subr.bf16.mxu0 %v2492
    %2587 = vmatpush1.bf16.msra.mxu0 %v2488
    %2588 = vmatprep.subr.bf16.mxu0 %v2508
    %2589 = vmatpush1.bf16.msra.mxu0 %v2504
    %2590 = vmatprep.subr.bf16.mxu0 %v2524
    %2591 = vmatpush1.bf16.msra.mxu0 %v2520
    %2592 = vmatprep.subr.bf16.mxu0 %v2541
    %2593 = vmatpush1.bf16.msra.mxu0 %v2538
    %2594 = vmatprep.subr.bf16.mxu0 0
    %2595 = vmatpush1.bf16.msra.mxu0 0
    %2596 = vmatprep.subr.bf16.mxu0 0
    %2597 = vmatpush1.bf16.msra.mxu0 0
    %2598 = vmatprep.subr.bf16.mxu0 0
    %2599 = vmatpush1.bf16.msra.mxu0 0
    %2600 = vmatprep.subr.bf16.mxu0 0
    %2601 = vmatpush1.bf16.msra.mxu0 0
    %2602 = vmatprep.subr.bf16.mxu0 0
    %2603 = vmatpush1.bf16.msra.mxu0 0
    %2604 = vmatprep.subr.bf16.mxu0 0
    %2605 = vmatpush1.bf16.msra.mxu0 0
    %2606 = vmatprep.subr.bf16.mxu0 0
    %2607 = vmatpush1.bf16.msra.mxu0 0
    %2608 = vmatprep.subr.bf16.mxu0 0
    %2609 = vmatpush1.bf16.msra.mxu0 0
    %2610 = vmatprep.subr.bf16.mxu0 0
    %2611 = vmatpush1.bf16.msra.mxu0 0
    %2612 = vmatprep.subr.bf16.mxu0 0
    %2613 = vmatpush1.bf16.msra.mxu0 0
    %2614 = vmatprep.subr.bf16.mxu0 0
    %2615 = vmatpush1.bf16.msra.mxu0 0
    %2616 = vmatprep.mubr.bf16.mxu0 0
    %2617 = vmatmul.mubr.bf16.gmra.mrb[0].mxu0 %v2529
    %v2618 = vpop.f32.mrb[0].mxu0
    %v2619 = vadd.f32 0.0, %v2618
    %v2620 = vpop.f32.mrb[0].mxu0
    %v2621 = vadd.f32 0.0, %v2620
    %v2622 = vpop.f32.mrb[0].mxu0
    %v2623 = vpop.f32.mrb[0].mxu0
    %2624 = vdwg.mxu0
    %v2625 = vmax.f32 %v2578, 0.0
    %v2626 = vmax.f32 %v2580, 0.0
    %v2627 = vmax.f32 %v2619, 0.0
    %v2628 = vmax.f32 %v2621, 0.0
    %v2629 = vpack.c.bf16 %v2625, %v2625
    %v2630 = vpack.c.bf16 %v2626, %v2626
    %v2631 = vpack.c.bf16 %v2627, %v2627
    %v2632 = vpack.c.bf16 %v2628, %v2628
    %v2633 = vld [vmem:[%s10] sm:$0x3]
    %vm2634 = vcmask 64512
    %v2636 = vsel %vm2634, %v2633, 0
    %v2639 = vsel %vm618, %v2629, 0
    %v2642 = vsel %vm618, %v2630, 0
    %v2645 = vsel %vm618, %v2631, 0
    %v2648 = vsel %vm618, %v2632, 0
    %2650 = vmatprep.subr.bf16.mxu0 %v2642
    %2651 = vmatpush1.bf16.msra.mxu0 %v2639
    %2652 = vmatprep.subr.bf16.mxu0 0
    %2653 = vmatpush1.bf16.msra.mxu0 0
    %2654 = vmatprep.subr.bf16.mxu0 0
    %2655 = vmatpush1.bf16.msra.mxu0 0
    %2656 = vmatprep.subr.bf16.mxu0 0
    %2657 = vmatpush1.bf16.msra.mxu0 0
    %2658 = vmatprep.subr.bf16.mxu0 0
    %2659 = vmatpush1.bf16.msra.mxu0 0
    %2660 = vmatprep.subr.bf16.mxu0 0
    %2661 = vmatpush1.bf16.msra.mxu0 0
    %2662 = vmatprep.subr.bf16.mxu0 0
    %2663 = vmatpush1.bf16.msra.mxu0 0
    %2664 = vmatprep.subr.bf16.mxu0 0
    %2665 = vmatpush1.bf16.msra.mxu0 0
    %2666 = vmatprep.subr.bf16.mxu0 0
    %2667 = vmatpush1.bf16.msra.mxu0 0
    %2668 = vmatprep.subr.bf16.mxu0 0
    %2669 = vmatpush1.bf16.msra.mxu0 0
    %2670 = vmatprep.subr.bf16.mxu0 0
    %2671 = vmatpush1.bf16.msra.mxu0 0
    %2672 = vmatprep.subr.bf16.mxu0 0
    %2673 = vmatpush1.bf16.msra.mxu0 0
    %2674 = vmatprep.subr.bf16.mxu0 0
    %2675 = vmatpush1.bf16.msra.mxu0 0
    %2676 = vmatprep.subr.bf16.mxu0 0
    %2677 = vmatpush1.bf16.msra.mxu0 0
    %2678 = vmatprep.subr.bf16.mxu0 0
    %2679 = vmatpush1.bf16.msra.mxu0 0
    %2680 = vmatprep.subr.bf16.mxu0 0
    %2681 = vmatpush1.bf16.msra.mxu0 0
    %2682 = vmatprep.mubr.bf16.mxu0 0
    %2683 = vmatmul.mubr.bf16.gmra.mrb[0].mxu0 %v2636
    %v2684 = vpop.f32.mrb[0].mxu0
    %v2685 = vadd.f32 0.0, %v2684
    %v2686 = vpop.f32.mrb[0].mxu0
    %v2687 = vadd.f32 0.0, %v2686
    %v2688 = vpop.f32.mrb[0].mxu0
    %v2689 = vpop.f32.mrb[0].mxu0
    %2690 = vdwg.mxu0
    %2691 = vmatprep.subr.bf16.mxu0 %v2648
    %2692 = vmatpush1.bf16.msra.mxu0 %v2645
    %2693 = vmatprep.subr.bf16.mxu0 0
    %2694 = vmatpush1.bf16.msra.mxu0 0
    %2695 = vmatprep.subr.bf16.mxu0 0
    %2696 = vmatpush1.bf16.msra.mxu0 0
    %2697 = vmatprep.subr.bf16.mxu0 0
    %2698 = vmatpush1.bf16.msra.mxu0 0
    %2699 = vmatprep.subr.bf16.mxu0 0
    %2700 = vmatpush1.bf16.msra.mxu0 0
    %2701 = vmatprep.subr.bf16.mxu0 0
    %2702 = vmatpush1.bf16.msra.mxu0 0
    %2703 = vmatprep.subr.bf16.mxu0 0
    %2704 = vmatpush1.bf16.msra.mxu0 0
    %2705 = vmatprep.subr.bf16.mxu0 0
    %2706 = vmatpush1.bf16.msra.mxu0 0
    %2707 = vmatprep.subr.bf16.mxu0 0
    %2708 = vmatpush1.bf16.msra.mxu0 0
    %2709 = vmatprep.subr.bf16.mxu0 0
    %2710 = vmatpush1.bf16.msra.mxu0 0
    %2711 = vmatprep.subr.bf16.mxu0 0
    %2712 = vmatpush1.bf16.msra.mxu0 0
    %2713 = vmatprep.subr.bf16.mxu0 0
    %2714 = vmatpush1.bf16.msra.mxu0 0
    %2715 = vmatprep.subr.bf16.mxu0 0
    %2716 = vmatpush1.bf16.msra.mxu0 0
    %2717 = vmatprep.subr.bf16.mxu0 0
    %2718 = vmatpush1.bf16.msra.mxu0 0
    %2719 = vmatprep.subr.bf16.mxu0 0
    %2720 = vmatpush1.bf16.msra.mxu0 0
    %2721 = vmatprep.subr.bf16.mxu0 0
    %2722 = vmatpush1.bf16.msra.mxu0 0
    %2723 = vmatprep.mubr.bf16.mxu0 0
    %2724 = vmatmul.mubr.bf16.gmra.mrb[0].mxu0 %v2636
    %v2725 = vpop.f32.mrb[0].mxu0
    %v2726 = vadd.f32 0.0, %v2725
    %v2727 = vpop.f32.mrb[0].mxu0
    %v2728 = vadd.f32 0.0, %v2727
    %v2729 = vpop.f32.mrb[0].mxu0
    %v2730 = vpop.f32.mrb[0].mxu0
    %2731 = vdwg.mxu0
    %v2736 = vcombine.low %v2685, %v2687
    %v2737 = vcombine.low %v2726, %v2728
    %v2740 = vadd.f32 %v54, %v2736
    %v2741 = vadd.f32 %v55, %v2737
    %2742 = vst [vmem:[#allocation5] sm:$0xff] %v2740
    %2743 = vst [vmem:[#allocation5 + $0x8] sm:$0xff] %v2741
    // Predicated region
    $region50: #{tpu_custom_call.1} parent=1 // pred_check
      _
    $region51: #{tpu_custom_call.1} parent=1 // pred_check_branch
      %2745 = sbr.rel (0) target = $region53
    $region52: #{tpu_custom_call.1} parent=1 // pred_region
      %s2747 = ssub.s32 256, 256
      %2748 = vsyncadd [#allocation4], %s2747
      %s2750 = sshll.u32 [#allocation5], 4
      %s2751 = int_to_ptr.vmem [resolvable:$true] %s2750
      %2753 = dma.vmem_to_hbm [thread:$0]  %s2751, 256, %s11, [#allocation4]
    $region53: #{tpu_custom_call.1} parent=1 // pred_fallthru
      _
    // Predicated region
    $region54: #{tpu_custom_call.1} parent=1 // pred_check
      _
    $region55: #{tpu_custom_call.1} parent=1 // pred_check_branch
      %2755 = sbr.rel (0) target = $region57
    $region56: #{tpu_custom_call.1} parent=1 // pred_region
      %2756 = dma.done [#allocation4], 256
    $region57: #{tpu_custom_call.1} parent=1 // pred_fallthru
      _
    %2757 = vsyncpa [#allocation3], 1
    %2758 = vsyncpa [#allocation4], 1

</llo_original>
